<compile_context>
chip_gen: v5e
topology: v5e:2x2
jax: 0.10.0
libtpu: 0.0.40
codegen_flags: <defaults>
</compile_context>

<pallas_src>
import jax
import jax.numpy as jnp
from jax.experimental import pallas as pl
from jax.experimental.pallas import tpu as pltpu


HIDDEN = 512


def _round_up(x, m):
    return ((x + m - 1) // m) * m


def _choose_tile(B, block_b, min_steps, align=16):
    """Batch tile that minimizes zero padding, capped at block_b, with at
    least `min_steps` grid steps when the batch is big enough (v7x dual-TC)."""
    max_useful_steps = pl.cdiv(B, align)       # more steps than this only pads
    steps = max(pl.cdiv(B, block_b), min(min_steps, max_useful_steps))
    tb = min(_round_up(pl.cdiv(B, steps), align), block_b)
    return tb


def _disc_kernel(x_ref, w1_ref, b123_ref, w2_ref, w3_ref, w4_ref, b4_ref,
                 o_ref):
    """One batch tile of the 4-layer MLP; weights stay VMEM-resident."""

    def lrelu(h):
        # f32 select on the VPU (v5e has no bf16 VALU).
        return jnp.where(h > 0, h, 0.2 * h)

    b = b123_ref[...]                                    # [3, 512] f32

    # ---- Layer 1: fused img||labels, K zero-padded to a full MXU pass ----
    h = jnp.dot(x_ref[...], w1_ref[...], preferred_element_type=jnp.float32)
    h = lrelu(h + b[0:1, :])                             # [tb, 512] f32

    # ---- Layer 2 (Dropout -> identity in eval mode) ----------------------
    h = jnp.dot(h.astype(jnp.bfloat16), w2_ref[...],
                preferred_element_type=jnp.float32)
    h = lrelu(h + b[1:2, :])

    # ---- Layer 3 (Dropout -> identity in eval mode) ----------------------
    h = jnp.dot(h.astype(jnp.bfloat16), w3_ref[...],
                preferred_element_type=jnp.float32)
    h = lrelu(h + b[2:3, :])

    # ---- Layer 4: N=1 output -> VPU multiply + XLU lane reduction --------
    w4_row = w4_ref[...].astype(jnp.float32)             # [1, 512]
    out = jnp.sum(h * w4_row, axis=-1, keepdims=True)    # [tb, 1]
    o_ref[...] = (out + b4_ref[0]).astype(o_ref.dtype)


def discriminator_forward(img, labels, params, *, block_b=1024, min_steps=2):
    """img: [B, img_size] f32, labels: [B, n_classes] f32 -> validity [B, 1]."""
    B, img_size = img.shape
    n_classes = labels.shape[1]
    (w1, b1), (w2, b2), (w3, b3), (w4, b4) = params

    K = img_size + n_classes
    Kp = _round_up(K, 128)                     # full MXU K fill

    block_b = max(16, (block_b // 16) * 16)    # bf16 sublane alignment
    tb = _choose_tile(B, block_b, min_steps)
    grid = (pl.cdiv(B, tb),)
    Bp = grid[0] * tb

    # Fused, K-padded, bf16 input: [Bp, Kp].
    x = jnp.concatenate([img, labels], axis=-1)
    x = jnp.pad(x, ((0, Bp - B), (0, Kp - K))).astype(jnp.bfloat16)

    # Weight / bias prep (weights bf16, biases f32).
    w1p = jnp.pad(w1, ((0, Kp - K), (0, 0)))             # [Kp, 512] bf16
    w4_row = w4.reshape(1, HIDDEN)                        # [1, 512] bf16
    b123 = jnp.concatenate([b1, b2, b3], axis=0)          # [3, 512] f32
    b4s = b4.reshape(1)                                   # [1] f32 (SMEM)

    pinned = lambda shape: pl.BlockSpec(shape, lambda i: (0, 0))

    out = pl.pallas_call(
        _disc_kernel,
        out_shape=jax.ShapeDtypeStruct((Bp, 1), jnp.float32),
        grid=grid,
        in_specs=[
            pl.BlockSpec((tb, Kp), lambda i: (i, 0)),     # input tile
            pinned((Kp, HIDDEN)),                         # W1 (K-padded)
            pinned((3, HIDDEN)),                          # b1/b2/b3 packed
            pinned((HIDDEN, HIDDEN)),                     # W2
            pinned((HIDDEN, HIDDEN)),                     # W3
            pinned((1, HIDDEN)),                          # W4 as a row
            pl.BlockSpec(memory_space=pltpu.MemorySpace.SMEM),   # b4 scalar
        ],
        out_specs=pl.BlockSpec((tb, 1), lambda i: (i, 0)),
        compiler_params=pltpu.CompilerParams(
            dimension_semantics=("parallel",)),
    )(x, w1p, b123, w2, w3, w4_row, b4s)

    return out[:B]


def init_params(key, img_size, n_classes):
    """PyTorch-Linear-style uniform init; weights stored bf16, biases f32."""
    dims = [(img_size + n_classes, HIDDEN),
            (HIDDEN, HIDDEN),
            (HIDDEN, HIDDEN),
            (HIDDEN, 1)]
    params = []
    for (fan_in, fan_out) in dims:
        key, kw, kb = jax.random.split(key, 3)
        bound = 1.0 / jnp.sqrt(fan_in)
        w = jax.random.uniform(kw, (fan_in, fan_out), jnp.float32, -bound, bound)
        b = jax.random.uniform(kb, (1, fan_out), jnp.float32, -bound, bound)
        params.append((w.astype(jnp.bfloat16), b))
    return params


def _reference_forward(img, labels, params):
    """Plain-JAX reference mirroring the kernel's bf16-in / f32-acc numerics."""
    (w1, b1), (w2, b2), (w3, b3), (w4, b4) = params
    x = jnp.concatenate([img, labels], axis=-1)
    lrelu = lambda t: jnp.where(t > 0, t, 0.2 * t)

    def dot_bf16(a, w):
        return jnp.dot(a.astype(jnp.bfloat16), w,
                       preferred_element_type=jnp.float32)

    h = lrelu(dot_bf16(x, w1) + b1)
    h = lrelu(dot_bf16(h, w2) + b2)
    h = lrelu(dot_bf16(h, w3) + b3)
    return h @ w4.astype(jnp.float32) + b4


if __name__ == "__main__":
    img_size = 64        # flattened image dimension
    n_classes = 10
    batch = 8

    key = jax.random.PRNGKey(0)
    k_img, k_lab, k_par = jax.random.split(key, 3)

    img = jax.random.normal(k_img, (batch, img_size), jnp.float32)
    # one-hot labels, as used by the cGAN discriminator
    lab_idx = jax.random.randint(k_lab, (batch,), 0, n_classes)
    labels = jax.nn.one_hot(lab_idx, n_classes, dtype=jnp.float32)

    params = init_params(k_par, img_size, n_classes)

    validity = discriminator_forward(img, labels, params)
    validity = jax.block_until_ready(validity)

    ref = _reference_forward(img, labels, params)
    assert validity.shape == (batch, 1)
    assert jnp.allclose(validity, ref, atol=1e-2, rtol=1e-2), (
        jnp.max(jnp.abs(validity - ref)))

    print("KERNEL_OK")
</pallas_src>

<mosaic_0001>
module attributes {stable_mosaic.version = 11 : i64} {
  func.func @_disc_kernel(%arg0: i32, %arg1: memref<16x128xbf16, #tpu.memory_space<vmem>>, %arg2: memref<128x512xbf16, #tpu.memory_space<vmem>>, %arg3: memref<3x512xf32, #tpu.memory_space<vmem>>, %arg4: memref<512x512xbf16, #tpu.memory_space<vmem>>, %arg5: memref<512x512xbf16, #tpu.memory_space<vmem>>, %arg6: memref<1x512xbf16, #tpu.memory_space<vmem>>, %arg7: memref<1xf32, #tpu.memory_space<smem>>, %arg8: memref<16x1xf32, #tpu.memory_space<vmem>>) attributes {dimension_semantics = [#tpu.dimension_semantics<parallel>], iteration_bounds = array<i64: 1>, scalar_prefetch = 0 : i64, scratch_operands = 0 : i64, tpu.core_type = #tpu.core_type<tc>, window_params = [{transform_indices = @transform_0, window_bounds = array<i64: 16, 128>}, {pipeline_mode = #tpu.pipeline_mode<synchronous>, transform_indices = @transform_1, window_bounds = array<i64: 128, 512>}, {pipeline_mode = #tpu.pipeline_mode<synchronous>, transform_indices = @transform_2, window_bounds = array<i64: 3, 512>}, {pipeline_mode = #tpu.pipeline_mode<synchronous>, transform_indices = @transform_3, window_bounds = array<i64: 512, 512>}, {pipeline_mode = #tpu.pipeline_mode<synchronous>, transform_indices = @transform_4, window_bounds = array<i64: 512, 512>}, {pipeline_mode = #tpu.pipeline_mode<synchronous>, transform_indices = @transform_5, window_bounds = array<i64: 1, 512>}, {transform_indices = @transform_6, window_bounds = array<i64: 1>}, {transform_indices = @transform_7, window_bounds = array<i64: 16, 1>}]} {
    %c0 = arith.constant 0 : index
    %c0_0 = arith.constant 0 : index
    %0 = vector.load %arg3[%c0, %c0_0] : memref<3x512xf32, #tpu.memory_space<vmem>>, vector<3x512xf32>
    %c0_1 = arith.constant 0 : index
    %c0_2 = arith.constant 0 : index
    %1 = vector.load %arg1[%c0_1, %c0_2] : memref<16x128xbf16, #tpu.memory_space<vmem>>, vector<16x128xbf16>
    %c0_3 = arith.constant 0 : index
    %c0_4 = arith.constant 0 : index
    %2 = vector.load %arg2[%c0_3, %c0_4] : memref<128x512xbf16, #tpu.memory_space<vmem>>, vector<128x512xbf16>
    %cst = arith.constant dense<0.000000e+00> : vector<16x512xf32>
    %3 = tpu.matmul %1, %2, %cst {dimension_numbers = #tpu.dot_dimension_numbers<[1], [0], [0], [1], [0, 0, 1, 1], [], []>} : vector<16x128xbf16>, vector<128x512xbf16>, vector<16x512xf32> -> vector<16x512xf32>
    %4 = vector.extract_strided_slice %0 {offsets = [0, 0], sizes = [1, 512], strides = [1, 1]} : vector<3x512xf32> to vector<1x512xf32>
    %5 = vector.broadcast %4 : vector<1x512xf32> to vector<16x512xf32>
    %6 = arith.addf %3, %5 : vector<16x512xf32>
    %cst_5 = arith.constant 0.000000e+00 : f32
    %7 = vector.broadcast %cst_5 : f32 to vector<16x512xf32>
    %8 = arith.cmpf ogt, %6, %7 : vector<16x512xf32>
    %cst_6 = arith.constant 2.000000e-01 : f32
    %9 = vector.broadcast %cst_6 : f32 to vector<16x512xf32>
    %10 = arith.mulf %9, %6 : vector<16x512xf32>
    %11 = arith.select %8, %6, %10 : vector<16x512xi1>, vector<16x512xf32>
    %12 = arith.truncf %11 : vector<16x512xf32> to vector<16x512xbf16>
    %c0_7 = arith.constant 0 : index
    %c0_8 = arith.constant 0 : index
    %13 = vector.load %arg4[%c0_7, %c0_8] : memref<512x512xbf16, #tpu.memory_space<vmem>>, vector<512x512xbf16>
    %cst_9 = arith.constant dense<0.000000e+00> : vector<16x512xf32>
    %14 = tpu.matmul %12, %13, %cst_9 {dimension_numbers = #tpu.dot_dimension_numbers<[1], [0], [0], [1], [0, 0, 1, 1], [], []>} : vector<16x512xbf16>, vector<512x512xbf16>, vector<16x512xf32> -> vector<16x512xf32>
    %15 = vector.extract_strided_slice %0 {offsets = [1, 0], sizes = [1, 512], strides = [1, 1]} : vector<3x512xf32> to vector<1x512xf32>
    %16 = vector.broadcast %15 : vector<1x512xf32> to vector<16x512xf32>
    %17 = arith.addf %14, %16 : vector<16x512xf32>
    %cst_10 = arith.constant 0.000000e+00 : f32
    %18 = vector.broadcast %cst_10 : f32 to vector<16x512xf32>
    %19 = arith.cmpf ogt, %17, %18 : vector<16x512xf32>
    %cst_11 = arith.constant 2.000000e-01 : f32
    %20 = vector.broadcast %cst_11 : f32 to vector<16x512xf32>
    %21 = arith.mulf %20, %17 : vector<16x512xf32>
    %22 = arith.select %19, %17, %21 : vector<16x512xi1>, vector<16x512xf32>
    %23 = arith.truncf %22 : vector<16x512xf32> to vector<16x512xbf16>
    %c0_12 = arith.constant 0 : index
    %c0_13 = arith.constant 0 : index
    %24 = vector.load %arg5[%c0_12, %c0_13] : memref<512x512xbf16, #tpu.memory_space<vmem>>, vector<512x512xbf16>
    %cst_14 = arith.constant dense<0.000000e+00> : vector<16x512xf32>
    %25 = tpu.matmul %23, %24, %cst_14 {dimension_numbers = #tpu.dot_dimension_numbers<[1], [0], [0], [1], [0, 0, 1, 1], [], []>} : vector<16x512xbf16>, vector<512x512xbf16>, vector<16x512xf32> -> vector<16x512xf32>
    %26 = vector.extract_strided_slice %0 {offsets = [2, 0], sizes = [1, 512], strides = [1, 1]} : vector<3x512xf32> to vector<1x512xf32>
    %27 = vector.broadcast %26 : vector<1x512xf32> to vector<16x512xf32>
    %28 = arith.addf %25, %27 : vector<16x512xf32>
    %cst_15 = arith.constant 0.000000e+00 : f32
    %29 = vector.broadcast %cst_15 : f32 to vector<16x512xf32>
    %30 = arith.cmpf ogt, %28, %29 : vector<16x512xf32>
    %cst_16 = arith.constant 2.000000e-01 : f32
    %31 = vector.broadcast %cst_16 : f32 to vector<16x512xf32>
    %32 = arith.mulf %31, %28 : vector<16x512xf32>
    %33 = arith.select %30, %28, %32 : vector<16x512xi1>, vector<16x512xf32>
    %c0_17 = arith.constant 0 : index
    %c0_18 = arith.constant 0 : index
    %34 = vector.load %arg6[%c0_17, %c0_18] : memref<1x512xbf16, #tpu.memory_space<vmem>>, vector<1x512xbf16>
    %35 = arith.extf %34 : vector<1x512xbf16> to vector<1x512xf32>
    %36 = vector.broadcast %35 : vector<1x512xf32> to vector<16x512xf32>
    %37 = arith.mulf %33, %36 : vector<16x512xf32>
    %cst_19 = arith.constant dense<0.000000e+00> : vector<16xf32>
    %38 = vector.multi_reduction <add>, %37, %cst_19 [1] : vector<16x512xf32> to vector<16xf32>
    %39 = vector.shape_cast %38 : vector<16xf32> to vector<16x1xf32>
    %c0_20 = arith.constant 0 : index
    %40 = memref.load %arg7[%c0_20] : memref<1xf32, #tpu.memory_space<smem>>
    %41 = vector.broadcast %40 : f32 to vector<16x1xf32>
    %42 = arith.addf %39, %41 : vector<16x1xf32>
    %c0_21 = arith.constant 0 : index
    %c0_22 = arith.constant 0 : index
    %43 = vector.load %arg8[%c0_21, %c0_22] : memref<16x1xf32, #tpu.memory_space<vmem>>, vector<16x1xf32>
    tpu.vector_store %arg8[%c0_21, %c0_22], %42 {strides = array<i32>} : memref<16x1xf32, #tpu.memory_space<vmem>>, vector<16x1xf32>,
    return
  }
  func.func @transform_0(%arg0: i32) -> (i32, i32) {
    %c0_i32 = arith.constant 0 : i32
    %c0_i32_0 = arith.constant 0 : i32
    return %arg0, %c0_i32 : i32, i32
  }
  func.func @transform_1(%arg0: i32) -> (i32, i32) {
    %c0_i32 = arith.constant 0 : i32
    %c0_i32_0 = arith.constant 0 : i32
    %c0_i32_1 = arith.constant 0 : i32
    return %c0_i32, %c0_i32_0 : i32, i32
  }
  func.func @transform_2(%arg0: i32) -> (i32, i32) {
    %c0_i32 = arith.constant 0 : i32
    %c0_i32_0 = arith.constant 0 : i32
    %c0_i32_1 = arith.constant 0 : i32
    return %c0_i32, %c0_i32_0 : i32, i32
  }
  func.func @transform_3(%arg0: i32) -> (i32, i32) {
    %c0_i32 = arith.constant 0 : i32
    %c0_i32_0 = arith.constant 0 : i32
    %c0_i32_1 = arith.constant 0 : i32
    return %c0_i32, %c0_i32_0 : i32, i32
  }
  func.func @transform_4(%arg0: i32) -> (i32, i32) {
    %c0_i32 = arith.constant 0 : i32
    %c0_i32_0 = arith.constant 0 : i32
    %c0_i32_1 = arith.constant 0 : i32
    return %c0_i32, %c0_i32_0 : i32, i32
  }
  func.func @transform_5(%arg0: i32) -> (i32, i32) {
    %c0_i32 = arith.constant 0 : i32
    %c0_i32_0 = arith.constant 0 : i32
    %c0_i32_1 = arith.constant 0 : i32
    return %c0_i32, %c0_i32_0 : i32, i32
  }
  func.func @transform_6(%arg0: i32) -> i32 {
    %c0_i32 = arith.constant 0 : i32
    %c0_i32_0 = arith.constant 0 : i32
    return %c0_i32 : i32
  }
  func.func @transform_7(%arg0: i32) -> (i32, i32) {
    %c0_i32 = arith.constant 0 : i32
    %c0_i32_0 = arith.constant 0 : i32
    return %arg0, %c0_i32 : i32, i32
  }
}

</mosaic_0001>

<llo_original>
// kernel: tpu_custom_call.1
$region0: #{tpu_custom_call.1}
  #allocation0 [shape = 'u32[]', space=smem, size = 0x4, offset = 0x4, fixed_abs, tag = 'smem constant byte address 0x4 - core index']
  #allocation1 [shape = 'u32[72,128]{1,0:T(1,128)}', space=vmem, size = 0x9000, scoped, tag = 'internal scratch']
  #allocation2 [shape = 'f32[1]{0:T(128)S(6)}', space=smem, size = 0x200, scoped, tag = 'scoped memory for tpu_custom_call.1']
  %s0 = inlined_call_operand.hbm [shape: bf16[16,128], index: 0, kind: input, shape index: {}]
  %s1 = inlined_call_operand.hbm [shape: bf16[128,512], index: 1, kind: input, shape index: {}]
  %s2 = inlined_call_operand.hbm [shape: f32[3,512], index: 2, kind: input, shape index: {}]
  %s3 = inlined_call_operand.hbm [shape: bf16[512,512], index: 3, kind: input, shape index: {}]
  %s4 = inlined_call_operand.hbm [shape: bf16[512,512], index: 4, kind: input, shape index: {}]
  %s5 = inlined_call_operand.vmem [shape: bf16[1,512], index: 5, kind: input, shape index: {}]
  %s6 = inlined_call_operand.<no memory space> [shape: f32[1], index: 6, kind: input, shape index: {}]
  %s7 = inlined_call_operand.vmem [shape: f32[16,1], index: 7, kind: output, shape index: {}]
  %s8 = sld [smem:[#allocation0]]
  $region58: #{tpu_custom_call.1} parent=0
    _
  %s10 = ssub.s32 1, %s8
  %s11 = scalar_select 0, %s10, %s8
  %12 = sst [smem:[#allocation2]] %s6
  $region1: #{tpu_custom_call.1} parent=0
    #allocation3 [shape = 'u8[4096]{0}', space=vmem, size = 0x1000, scoped, tag = 'input window, operand 0, single buffered']
    #allocation4 [shape = 's32[1]{0}', space=sflag, size = 0x4, scoped, tag = 'scoped memory for tpu_custom_call.1']
    #allocation5 [shape = 'u8[131072]{0}', space=vmem, size = 0x20000, scoped, tag = 'input window, operand 1, single buffered']
    #allocation6 [shape = 's32[1]{0}', space=sflag, size = 0x4, scoped, tag = 'scoped memory for tpu_custom_call.1']
    #allocation7 [shape = 'u8[8192]{0}', space=vmem, size = 0x2000, scoped, tag = 'input window, operand 2, single buffered']
    #allocation8 [shape = 'u8[524288]{0}', space=vmem, size = 0x80000, scoped, tag = 'input window, operand 3, single buffered']
    #allocation9 [shape = 's32[1]{0}', space=sflag, size = 0x4, scoped, tag = 'scoped memory for tpu_custom_call.1']
    #allocation10 [shape = 'u8[524288]{0}', space=vmem, size = 0x80000, scoped, tag = 'input window, operand 4, single buffered']
    %13 = vsyncpa [#allocation4], 0
    %14 = vsyncpa [#allocation6], 0
    %15 = vsyncpa [#allocation9], 0
    // Predicated region
    $region2: #{tpu_custom_call.1} parent=1 // pred_check
      _
    $region3: #{tpu_custom_call.1} parent=1 // pred_check_branch
      %17 = sbr.rel (0) target = $region5
    $region4: #{tpu_custom_call.1} parent=1 // pred_region
      %19 = vsyncadd [#allocation4], 0
      %s20 = sshll.u32 %s0, 4
      %s21 = int_to_ptr.hbm [resolvable:$true] %s20
      %s22 = sshll.u32 [#allocation3], 4
      %s23 = int_to_ptr.vmem [resolvable:$true] %s22
      %28 = dma.hbm_to_vmem [thread:$0]  %s21, 128, %s23, [#allocation4], 64, 64, 4
    $region5: #{tpu_custom_call.1} parent=1 // pred_fallthru
      _
    // Predicated region
    $region6: #{tpu_custom_call.1} parent=1 // pred_check
      _
    $region7: #{tpu_custom_call.1} parent=1 // pred_check_branch
      %30 = sbr.rel (0) target = $region9
    $region8: #{tpu_custom_call.1} parent=1 // pred_region
      %32 = vsyncadd [#allocation6], 0
      %s33 = sshll.u32 %s1, 4
      %s34 = int_to_ptr.hbm [resolvable:$true] %s33
      %s35 = sshll.u32 [#allocation5], 4
      %s36 = int_to_ptr.vmem [resolvable:$true] %s35
      %41 = dma.hbm_to_vmem [thread:$0]  %s34, 4096, %s36, [#allocation6], 256, 256, 16
    $region9: #{tpu_custom_call.1} parent=1 // pred_fallthru
      _
    // Predicated region
    $region10: #{tpu_custom_call.1} parent=1 // pred_check
      _
    $region11: #{tpu_custom_call.1} parent=1 // pred_check_branch
      %43 = sbr.rel (0) target = $region13
    $region12: #{tpu_custom_call.1} parent=1 // pred_region
      %45 = vsyncadd [#allocation6], 0
      %s47 = sshll.u32 %s2, 4
      %s48 = int_to_ptr.hbm [resolvable:$true] %s47
      %s49 = sshll.u32 [#allocation7], 4
      %s50 = int_to_ptr.vmem [resolvable:$true] %s49
      %52 = dma.hbm_to_vmem [thread:$0]  %s48, 256, %s50, [#allocation6]
    $region13: #{tpu_custom_call.1} parent=1 // pred_fallthru
      _
    // Predicated region
    $region14: #{tpu_custom_call.1} parent=1 // pred_check
      _
    $region15: #{tpu_custom_call.1} parent=1 // pred_check_branch
      %54 = sbr.rel (0) target = $region17
    $region16: #{tpu_custom_call.1} parent=1 // pred_region
      %56 = vsyncadd [#allocation9], 0
      %s57 = sshll.u32 %s3, 4
      %s58 = int_to_ptr.hbm [resolvable:$true] %s57
      %s59 = sshll.u32 [#allocation8], 4
      %s60 = int_to_ptr.vmem [resolvable:$true] %s59
      %65 = dma.hbm_to_vmem [thread:$0]  %s58, 16384, %s60, [#allocation9], 256, 256, 16
    $region17: #{tpu_custom_call.1} parent=1 // pred_fallthru
      _
    // Predicated region
    $region18: #{tpu_custom_call.1} parent=1 // pred_check
      _
    $region19: #{tpu_custom_call.1} parent=1 // pred_check_branch
      %67 = sbr.rel (0) target = $region21
    $region20: #{tpu_custom_call.1} parent=1 // pred_region
      %69 = vsyncadd [#allocation9], 0
      %s70 = sshll.u32 %s4, 4
      %s71 = int_to_ptr.hbm [resolvable:$true] %s70
      %s72 = sshll.u32 [#allocation10], 4
      %s73 = int_to_ptr.vmem [resolvable:$true] %s72
      %78 = dma.hbm_to_vmem [thread:$0]  %s71, 16384, %s73, [#allocation9], 256, 256, 16
    $region21: #{tpu_custom_call.1} parent=1 // pred_fallthru
      _
    // Predicated region
    $region22: #{tpu_custom_call.1} parent=1 // pred_check
      _
    $region23: #{tpu_custom_call.1} parent=1 // pred_check_branch
      %80 = sbr.rel (0) target = $region25
    $region24: #{tpu_custom_call.1} parent=1 // pred_region
      _
    $region25: #{tpu_custom_call.1} parent=1 // pred_fallthru
      _
    // Predicated region
    $region26: #{tpu_custom_call.1} parent=1 // pred_check
      _
    $region27: #{tpu_custom_call.1} parent=1 // pred_check_branch
      %82 = sbr.rel (0) target = $region29
    $region28: #{tpu_custom_call.1} parent=1 // pred_region
      _
    $region29: #{tpu_custom_call.1} parent=1 // pred_fallthru
      _
    // Predicated region
    $region30: #{tpu_custom_call.1} parent=1 // pred_check
      _
    $region31: #{tpu_custom_call.1} parent=1 // pred_check_branch
      %84 = sbr.rel (0) target = $region33
    $region32: #{tpu_custom_call.1} parent=1 // pred_region
      %86 = dma.done [#allocation4], 128
    $region33: #{tpu_custom_call.1} parent=1 // pred_fallthru
      _
    // Predicated region
    $region34: #{tpu_custom_call.1} parent=1 // pred_check
      _
    $region35: #{tpu_custom_call.1} parent=1 // pred_check_branch
      %88 = sbr.rel (0) target = $region37
    $region36: #{tpu_custom_call.1} parent=1 // pred_region
      %90 = dma.done [#allocation6], 4096
    $region37: #{tpu_custom_call.1} parent=1 // pred_fallthru
      _
    // Predicated region
    $region38: #{tpu_custom_call.1} parent=1 // pred_check
      _
    $region39: #{tpu_custom_call.1} parent=1 // pred_check_branch
      %92 = sbr.rel (0) target = $region41
    $region40: #{tpu_custom_call.1} parent=1 // pred_region
      %94 = dma.done [#allocation6], 256
    $region41: #{tpu_custom_call.1} parent=1 // pred_fallthru
      _
    // Predicated region
    $region42: #{tpu_custom_call.1} parent=1 // pred_check
      _
    $region43: #{tpu_custom_call.1} parent=1 // pred_check_branch
      %96 = sbr.rel (0) target = $region45
    $region44: #{tpu_custom_call.1} parent=1 // pred_region
      %98 = dma.done [#allocation9], 16384
    $region45: #{tpu_custom_call.1} parent=1 // pred_fallthru
      _
    // Predicated region
    $region46: #{tpu_custom_call.1} parent=1 // pred_check
      _
    $region47: #{tpu_custom_call.1} parent=1 // pred_check_branch
      %100 = sbr.rel (0) target = $region49
    $region48: #{tpu_custom_call.1} parent=1 // pred_region
      %102 = dma.done [#allocation9], 16384
    $region49: #{tpu_custom_call.1} parent=1 // pred_fallthru
      _
    %v103 = vld [vmem:[#allocation7] sm:$0x77]
    %v104 = vld [vmem:[#allocation7 + $0x8] sm:$0x77]
    %v105 = vld [vmem:[#allocation3] sm:$0xf]
    %v106 = vld [vmem:[#allocation3 + $0x4] sm:$0xf]
    %v107 = vld [vmem:[#allocation5] sm:$0xff]
    %v108 = vld [vmem:[#allocation5 + $0x8] sm:$0xff]
    %v109 = vld [vmem:[#allocation5 + $0x10] sm:$0xff]
    %v110 = vld [vmem:[#allocation5 + $0x18] sm:$0xff]
    %v111 = vld [vmem:[#allocation5 + $0x20] sm:$0xff]
    %v112 = vld [vmem:[#allocation5 + $0x28] sm:$0xff]
    %v113 = vld [vmem:[#allocation5 + $0x30] sm:$0xff]
    %v114 = vld [vmem:[#allocation5 + $0x38] sm:$0xff]
    %v115 = vld [vmem:[#allocation5 + $0x40] sm:$0xff]
    %v116 = vld [vmem:[#allocation5 + $0x48] sm:$0xff]
    %v117 = vld [vmem:[#allocation5 + $0x50] sm:$0xff]
    %v118 = vld [vmem:[#allocation5 + $0x58] sm:$0xff]
    %v119 = vld [vmem:[#allocation5 + $0x60] sm:$0xff]
    %v120 = vld [vmem:[#allocation5 + $0x68] sm:$0xff]
    %v121 = vld [vmem:[#allocation5 + $0x70] sm:$0xff]
    %v122 = vld [vmem:[#allocation5 + $0x78] sm:$0xff]
    %v123 = vld [vmem:[#allocation5 + $0x80] sm:$0xff]
    %v124 = vld [vmem:[#allocation5 + $0x88] sm:$0xff]
    %v125 = vld [vmem:[#allocation5 + $0x90] sm:$0xff]
    %v126 = vld [vmem:[#allocation5 + $0x98] sm:$0xff]
    %v127 = vld [vmem:[#allocation5 + $0xa0] sm:$0xff]
    %v128 = vld [vmem:[#allocation5 + $0xa8] sm:$0xff]
    %v129 = vld [vmem:[#allocation5 + $0xb0] sm:$0xff]
    %v130 = vld [vmem:[#allocation5 + $0xb8] sm:$0xff]
    %v131 = vld [vmem:[#allocation5 + $0xc0] sm:$0xff]
    %v132 = vld [vmem:[#allocation5 + $0xc8] sm:$0xff]
    %v133 = vld [vmem:[#allocation5 + $0xd0] sm:$0xff]
    %v134 = vld [vmem:[#allocation5 + $0xd8] sm:$0xff]
    %v135 = vld [vmem:[#allocation5 + $0xe0] sm:$0xff]
    %v136 = vld [vmem:[#allocation5 + $0xe8] sm:$0xff]
    %v137 = vld [vmem:[#allocation5 + $0xf0] sm:$0xff]
    %v138 = vld [vmem:[#allocation5 + $0xf8] sm:$0xff]
    %v141 = vperm.slane %v103, 0
    %v142 = vperm.slane %v103, 4
    %v143 = vperm.slane %v104, 0
    %v144 = vperm.slane %v104, 4
    %v149 = vperm.slane %v141, 0
    %v150 = vperm.slane %v142, 0
    %v151 = vperm.slane %v143, 0
    %v152 = vperm.slane %v144, 0
    %v155 = vunpack.c.l.b16 %v105
    %v156 = vunpack.c.l.b16 %v106
    %v157 = vpack.c.b16 %v156, %v155
    %v191 = vunpack.c.l.b16 %v107
    %v192 = vunpack.c.h.b16 %v107
    %v193 = vunpack.c.l.b16 %v108
    %v194 = vunpack.c.h.b16 %v108
    %v195 = vunpack.c.l.b16 %v109
    %v196 = vunpack.c.h.b16 %v109
    %v197 = vunpack.c.l.b16 %v110
    %v198 = vunpack.c.h.b16 %v110
    %v199 = vunpack.c.l.b16 %v111
    %v200 = vunpack.c.h.b16 %v111
    %v201 = vunpack.c.l.b16 %v112
    %v202 = vunpack.c.h.b16 %v112
    %v203 = vunpack.c.l.b16 %v113
    %v204 = vunpack.c.h.b16 %v113
    %v205 = vunpack.c.l.b16 %v114
    %v206 = vunpack.c.h.b16 %v114
    %v207 = vunpack.c.l.b16 %v115
    %v208 = vunpack.c.h.b16 %v115
    %v209 = vunpack.c.l.b16 %v116
    %v210 = vunpack.c.h.b16 %v116
    %v211 = vunpack.c.l.b16 %v117
    %v212 = vunpack.c.h.b16 %v117
    %v213 = vunpack.c.l.b16 %v118
    %v214 = vunpack.c.h.b16 %v118
    %v215 = vunpack.c.l.b16 %v119
    %v216 = vunpack.c.h.b16 %v119
    %v217 = vunpack.c.l.b16 %v120
    %v218 = vunpack.c.h.b16 %v120
    %v219 = vunpack.c.l.b16 %v121
    %v220 = vunpack.c.h.b16 %v121
    %v221 = vunpack.c.l.b16 %v122
    %v222 = vunpack.c.h.b16 %v122
    %v223 = vunpack.c.l.b16 %v123
    %v224 = vunpack.c.h.b16 %v123
    %v225 = vunpack.c.l.b16 %v124
    %v226 = vunpack.c.h.b16 %v124
    %v227 = vunpack.c.l.b16 %v125
    %v228 = vunpack.c.h.b16 %v125
    %v229 = vunpack.c.l.b16 %v126
    %v230 = vunpack.c.h.b16 %v126
    %v231 = vunpack.c.l.b16 %v127
    %v232 = vunpack.c.h.b16 %v127
    %v233 = vunpack.c.l.b16 %v128
    %v234 = vunpack.c.h.b16 %v128
    %v235 = vunpack.c.l.b16 %v129
    %v236 = vunpack.c.h.b16 %v129
    %v237 = vunpack.c.l.b16 %v130
    %v238 = vunpack.c.h.b16 %v130
    %v239 = vunpack.c.l.b16 %v131
    %v240 = vunpack.c.h.b16 %v131
    %v241 = vunpack.c.l.b16 %v132
    %v242 = vunpack.c.h.b16 %v132
    %v243 = vunpack.c.l.b16 %v133
    %v244 = vunpack.c.h.b16 %v133
    %v245 = vunpack.c.l.b16 %v134
    %v246 = vunpack.c.h.b16 %v134
    %v247 = vunpack.c.l.b16 %v135
    %v248 = vunpack.c.h.b16 %v135
    %v249 = vunpack.c.l.b16 %v136
    %v250 = vunpack.c.h.b16 %v136
    %v251 = vunpack.c.l.b16 %v137
    %v252 = vunpack.c.h.b16 %v137
    %v253 = vunpack.c.l.b16 %v138
    %v254 = vunpack.c.h.b16 %v138
    %v255 = vpack.c.b16 %v195, %v191
    %v256 = vpack.c.b16 %v196, %v192
    %v257 = vpack.c.b16 %v197, %v193
    %v258 = vpack.c.b16 %v198, %v194
    %v259 = vpack.c.b16 %v203, %v199
    %v260 = vpack.c.b16 %v204, %v200
    %v261 = vpack.c.b16 %v205, %v201
    %v262 = vpack.c.b16 %v206, %v202
    %v263 = vpack.c.b16 %v211, %v207
    %v264 = vpack.c.b16 %v212, %v208
    %v265 = vpack.c.b16 %v213, %v209
    %v266 = vpack.c.b16 %v214, %v210
    %v267 = vpack.c.b16 %v219, %v215
    %v268 = vpack.c.b16 %v220, %v216
    %v269 = vpack.c.b16 %v221, %v217
    %v270 = vpack.c.b16 %v222, %v218
    %v271 = vpack.c.b16 %v227, %v223
    %v272 = vpack.c.b16 %v228, %v224
    %v273 = vpack.c.b16 %v229, %v225
    %v274 = vpack.c.b16 %v230, %v226
    %v275 = vpack.c.b16 %v235, %v231
    %v276 = vpack.c.b16 %v236, %v232
    %v277 = vpack.c.b16 %v237, %v233
    %v278 = vpack.c.b16 %v238, %v234
    %v279 = vpack.c.b16 %v243, %v239
    %v280 = vpack.c.b16 %v244, %v240
    %v281 = vpack.c.b16 %v245, %v241
    %v282 = vpack.c.b16 %v246, %v242
    %v283 = vpack.c.b16 %v251, %v247
    %v284 = vpack.c.b16 %v252, %v248
    %v285 = vpack.c.b16 %v253, %v249
    %v286 = vpack.c.b16 %v254, %v250
    %319 = vmatpush.bf16.msra.mxu0 %v283
    %320 = vmatpush.bf16.msra.mxu0 %v279
    %321 = vmatpush.bf16.msra.mxu0 %v275
    %322 = vmatpush.bf16.msra.mxu0 %v271
    %323 = vmatpush.bf16.msra.mxu0 %v267
    %324 = vmatpush.bf16.msra.mxu0 %v263
    %325 = vmatpush.bf16.msra.mxu0 %v259
    %326 = vmatpush.bf16.msra.mxu0 %v255
    %327 = vmatmul.bf16.gmra.mxu0 %v157
    %v328 = vpop.f32.mrf.mxu0
    %v329 = vadd.f32 %v149, %v328
    %v330 = vpop.f32.mrf.mxu0
    %v331 = vadd.f32 %v149, %v330
    %332 = vdwg.mxu0
    %333 = vmatpush.bf16.msra.mxu0 %v284
    %334 = vmatpush.bf16.msra.mxu0 %v280
    %335 = vmatpush.bf16.msra.mxu0 %v276
    %336 = vmatpush.bf16.msra.mxu0 %v272
    %337 = vmatpush.bf16.msra.mxu0 %v268
    %338 = vmatpush.bf16.msra.mxu0 %v264
    %339 = vmatpush.bf16.msra.mxu0 %v260
    %340 = vmatpush.bf16.msra.mxu0 %v256
    %341 = vmatmul.bf16.gmra.mxu0 %v157
    %v342 = vpop.f32.mrf.mxu0
    %v343 = vadd.f32 %v150, %v342
    %v344 = vpop.f32.mrf.mxu0
    %v345 = vadd.f32 %v150, %v344
    %346 = vdwg.mxu0
    %347 = vmatpush.bf16.msra.mxu0 %v285
    %348 = vmatpush.bf16.msra.mxu0 %v281
    %349 = vmatpush.bf16.msra.mxu0 %v277
    %350 = vmatpush.bf16.msra.mxu0 %v273
    %351 = vmatpush.bf16.msra.mxu0 %v269
    %352 = vmatpush.bf16.msra.mxu0 %v265
    %353 = vmatpush.bf16.msra.mxu0 %v261
    %354 = vmatpush.bf16.msra.mxu0 %v257
    %355 = vmatmul.bf16.gmra.mxu0 %v157
    %v356 = vpop.f32.mrf.mxu0
    %v357 = vadd.f32 %v151, %v356
    %v358 = vpop.f32.mrf.mxu0
    %v359 = vadd.f32 %v151, %v358
    %360 = vdwg.mxu0
    %361 = vmatpush.bf16.msra.mxu0 %v286
    %362 = vmatpush.bf16.msra.mxu0 %v282
    %363 = vmatpush.bf16.msra.mxu0 %v278
    %364 = vmatpush.bf16.msra.mxu0 %v274
    %365 = vmatpush.bf16.msra.mxu0 %v270
    %366 = vmatpush.bf16.msra.mxu0 %v266
    %367 = vmatpush.bf16.msra.mxu0 %v262
    %368 = vmatpush.bf16.msra.mxu0 %v258
    %369 = vmatmul.bf16.gmra.mxu0 %v157
    %v370 = vpop.f32.mrf.mxu0
    %v371 = vadd.f32 %v152, %v370
    %v372 = vpop.f32.mrf.mxu0
    %v373 = vadd.f32 %v152, %v372
    %374 = vdwg.mxu0
    %vm375 = vcmp.gt.f32.partialorder %v329, 0.0
    %vm376 = vcmp.gt.f32.partialorder %v343, 0.0
    %vm377 = vcmp.gt.f32.partialorder %v357, 0.0
    %vm378 = vcmp.gt.f32.partialorder %v371, 0.0
    %vm379 = vcmp.gt.f32.partialorder %v331, 0.0
    %vm380 = vcmp.gt.f32.partialorder %v345, 0.0
    %vm381 = vcmp.gt.f32.partialorder %v359, 0.0
    %vm382 = vcmp.gt.f32.partialorder %v373, 0.0
    %v383 = vmul.f32 %v329, 0.2
    %v384 = vmul.f32 %v343, 0.2
    %v385 = vmul.f32 %v357, 0.2
    %v386 = vmul.f32 %v371, 0.2
    %v387 = vmul.f32 %v331, 0.2
    %v388 = vmul.f32 %v345, 0.2
    %v389 = vmul.f32 %v359, 0.2
    %v390 = vmul.f32 %v373, 0.2
    %v391 = vsel %vm375, %v329, %v383
    %v392 = vsel %vm376, %v343, %v384
    %v393 = vsel %vm377, %v357, %v385
    %v394 = vsel %vm378, %v371, %v386
    %v395 = vsel %vm379, %v331, %v387
    %v396 = vsel %vm380, %v345, %v388
    %v397 = vsel %vm381, %v359, %v389
    %v398 = vsel %vm382, %v373, %v390
    %v399 = vpack.c.bf16 %v395, %v391
    %v400 = vpack.c.bf16 %v396, %v392
    %v401 = vpack.c.bf16 %v397, %v393
    %v402 = vpack.c.bf16 %v398, %v394
    %v403 = vld [vmem:[#allocation8] sm:$0xff]
    %v404 = vld [vmem:[#allocation8 + $0x8] sm:$0xff]
    %v405 = vld [vmem:[#allocation8 + $0x10] sm:$0xff]
    %v406 = vld [vmem:[#allocation8 + $0x18] sm:$0xff]
    %v407 = vld [vmem:[#allocation8 + $0x20] sm:$0xff]
    %v408 = vld [vmem:[#allocation8 + $0x28] sm:$0xff]
    %v409 = vld [vmem:[#allocation8 + $0x30] sm:$0xff]
    %v410 = vld [vmem:[#allocation8 + $0x38] sm:$0xff]
    %v411 = vld [vmem:[#allocation8 + $0x40] sm:$0xff]
    %v412 = vld [vmem:[#allocation8 + $0x48] sm:$0xff]
    %v413 = vld [vmem:[#allocation8 + $0x50] sm:$0xff]
    %v414 = vld [vmem:[#allocation8 + $0x58] sm:$0xff]
    %v415 = vld [vmem:[#allocation8 + $0x60] sm:$0xff]
    %v416 = vld [vmem:[#allocation8 + $0x68] sm:$0xff]
    %v417 = vld [vmem:[#allocation8 + $0x70] sm:$0xff]
    %v418 = vld [vmem:[#allocation8 + $0x78] sm:$0xff]
    %v419 = vld [vmem:[#allocation8 + $0x80] sm:$0xff]
    %v420 = vld [vmem:[#allocation8 + $0x88] sm:$0xff]
    %v421 = vld [vmem:[#allocation8 + $0x90] sm:$0xff]
    %v422 = vld [vmem:[#allocation8 + $0x98] sm:$0xff]
    %v423 = vld [vmem:[#allocation8 + $0xa0] sm:$0xff]
    %v424 = vld [vmem:[#allocation8 + $0xa8] sm:$0xff]
    %v425 = vld [vmem:[#allocation8 + $0xb0] sm:$0xff]
    %v426 = vld [vmem:[#allocation8 + $0xb8] sm:$0xff]
    %v427 = vld [vmem:[#allocation8 + $0xc0] sm:$0xff]
    %v428 = vld [vmem:[#allocation8 + $0xc8] sm:$0xff]
    %v429 = vld [vmem:[#allocation8 + $0xd0] sm:$0xff]
    %v430 = vld [vmem:[#allocation8 + $0xd8] sm:$0xff]
    %v431 = vld [vmem:[#allocation8 + $0xe0] sm:$0xff]
    %v432 = vld [vmem:[#allocation8 + $0xe8] sm:$0xff]
    %v433 = vld [vmem:[#allocation8 + $0xf0] sm:$0xff]
    %v434 = vld [vmem:[#allocation8 + $0xf8] sm:$0xff]
    %v435 = vld [vmem:[#allocation8 + $0x100] sm:$0xff]
    %v436 = vld [vmem:[#allocation8 + $0x108] sm:$0xff]
    %v437 = vld [vmem:[#allocation8 + $0x110] sm:$0xff]
    %v438 = vld [vmem:[#allocation8 + $0x118] sm:$0xff]
    %v439 = vld [vmem:[#allocation8 + $0x120] sm:$0xff]
    %v440 = vld [vmem:[#allocation8 + $0x128] sm:$0xff]
    %v441 = vld [vmem:[#allocation8 + $0x130] sm:$0xff]
    %v442 = vld [vmem:[#allocation8 + $0x138] sm:$0xff]
    %v443 = vld [vmem:[#allocation8 + $0x140] sm:$0xff]
    %v444 = vld [vmem:[#allocation8 + $0x148] sm:$0xff]
    %v445 = vld [vmem:[#allocation8 + $0x150] sm:$0xff]
    %v446 = vld [vmem:[#allocation8 + $0x158] sm:$0xff]
    %v447 = vld [vmem:[#allocation8 + $0x160] sm:$0xff]
    %v448 = vld [vmem:[#allocation8 + $0x168] sm:$0xff]
    %v449 = vld [vmem:[#allocation8 + $0x170] sm:$0xff]
    %v450 = vld [vmem:[#allocation8 + $0x178] sm:$0xff]
    %v451 = vld [vmem:[#allocation8 + $0x180] sm:$0xff]
    %v452 = vld [vmem:[#allocation8 + $0x188] sm:$0xff]
    %v453 = vld [vmem:[#allocation8 + $0x190] sm:$0xff]
    %v454 = vld [vmem:[#allocation8 + $0x198] sm:$0xff]
    %v455 = vld [vmem:[#allocation8 + $0x1a0] sm:$0xff]
    %v456 = vld [vmem:[#allocation8 + $0x1a8] sm:$0xff]
    %v457 = vld [vmem:[#allocation8 + $0x1b0] sm:$0xff]
    %v458 = vld [vmem:[#allocation8 + $0x1b8] sm:$0xff]
    %v459 = vld [vmem:[#allocation8 + $0x1c0] sm:$0xff]
    %v460 = vld [vmem:[#allocation8 + $0x1c8] sm:$0xff]
    %v461 = vld [vmem:[#allocation8 + $0x1d0] sm:$0xff]
    %v462 = vld [vmem:[#allocation8 + $0x1d8] sm:$0xff]
    %v463 = vld [vmem:[#allocation8 + $0x1e0] sm:$0xff]
    %v464 = vld [vmem:[#allocation8 + $0x1e8] sm:$0xff]
    %v465 = vld [vmem:[#allocation8 + $0x1f0] sm:$0xff]
    %v466 = vld [vmem:[#allocation8 + $0x1f8] sm:$0xff]
    %v467 = vld [vmem:[#allocation8 + $0x200] sm:$0xff]
    %v468 = vld [vmem:[#allocation8 + $0x208] sm:$0xff]
    %v469 = vld [vmem:[#allocation8 + $0x210] sm:$0xff]
    %v470 = vld [vmem:[#allocation8 + $0x218] sm:$0xff]
    %v471 = vld [vmem:[#allocation8 + $0x220] sm:$0xff]
    %v472 = vld [vmem:[#allocation8 + $0x228] sm:$0xff]
    %v473 = vld [vmem:[#allocation8 + $0x230] sm:$0xff]
    %v474 = vld [vmem:[#allocation8 + $0x238] sm:$0xff]
    %v475 = vld [vmem:[#allocation8 + $0x240] sm:$0xff]
    %v476 = vld [vmem:[#allocation8 + $0x248] sm:$0xff]
    %v477 = vld [vmem:[#allocation8 + $0x250] sm:$0xff]
    %v478 = vld [vmem:[#allocation8 + $0x258] sm:$0xff]
    %v479 = vld [vmem:[#allocation8 + $0x260] sm:$0xff]
    %v480 = vld [vmem:[#allocation8 + $0x268] sm:$0xff]
    %v481 = vld [vmem:[#allocation8 + $0x270] sm:$0xff]
    %v482 = vld [vmem:[#allocation8 + $0x278] sm:$0xff]
    %v483 = vld [vmem:[#allocation8 + $0x280] sm:$0xff]
    %v484 = vld [vmem:[#allocation8 + $0x288] sm:$0xff]
    %v485 = vld [vmem:[#allocation8 + $0x290] sm:$0xff]
    %v486 = vld [vmem:[#allocation8 + $0x298] sm:$0xff]
    %v487 = vld [vmem:[#allocation8 + $0x2a0] sm:$0xff]
    %v488 = vld [vmem:[#allocation8 + $0x2a8] sm:$0xff]
    %v489 = vld [vmem:[#allocation8 + $0x2b0] sm:$0xff]
    %v490 = vld [vmem:[#allocation8 + $0x2b8] sm:$0xff]
    %v491 = vld [vmem:[#allocation8 + $0x2c0] sm:$0xff]
    %v492 = vld [vmem:[#allocation8 + $0x2c8] sm:$0xff]
    %v493 = vld [vmem:[#allocation8 + $0x2d0] sm:$0xff]
    %v494 = vld [vmem:[#allocation8 + $0x2d8] sm:$0xff]
    %v495 = vld [vmem:[#allocation8 + $0x2e0] sm:$0xff]
    %v496 = vld [vmem:[#allocation8 + $0x2e8] sm:$0xff]
    %v497 = vld [vmem:[#allocation8 + $0x2f0] sm:$0xff]
    %v498 = vld [vmem:[#allocation8 + $0x2f8] sm:$0xff]
    %v499 = vld [vmem:[#allocation8 + $0x300] sm:$0xff]
    %v500 = vld [vmem:[#allocation8 + $0x308] sm:$0xff]
    %v501 = vld [vmem:[#allocation8 + $0x310] sm:$0xff]
    %v502 = vld [vmem:[#allocation8 + $0x318] sm:$0xff]
    %v503 = vld [vmem:[#allocation8 + $0x320] sm:$0xff]
    %v504 = vld [vmem:[#allocation8 + $0x328] sm:$0xff]
    %v505 = vld [vmem:[#allocation8 + $0x330] sm:$0xff]
    %v506 = vld [vmem:[#allocation8 + $0x338] sm:$0xff]
    %v507 = vld [vmem:[#allocation8 + $0x340] sm:$0xff]
    %v508 = vld [vmem:[#allocation8 + $0x348] sm:$0xff]
    %v509 = vld [vmem:[#allocation8 + $0x350] sm:$0xff]
    %v510 = vld [vmem:[#allocation8 + $0x358] sm:$0xff]
    %v511 = vld [vmem:[#allocation8 + $0x360] sm:$0xff]
    %v512 = vld [vmem:[#allocation8 + $0x368] sm:$0xff]
    %v513 = vld [vmem:[#allocation8 + $0x370] sm:$0xff]
    %v514 = vld [vmem:[#allocation8 + $0x378] sm:$0xff]
    %v515 = vld [vmem:[#allocation8 + $0x380] sm:$0xff]
    %v516 = vld [vmem:[#allocation8 + $0x388] sm:$0xff]
    %v517 = vld [vmem:[#allocation8 + $0x390] sm:$0xff]
    %v518 = vld [vmem:[#allocation8 + $0x398] sm:$0xff]
    %v519 = vld [vmem:[#allocation8 + $0x3a0] sm:$0xff]
    %v520 = vld [vmem:[#allocation8 + $0x3a8] sm:$0xff]
    %v521 = vld [vmem:[#allocation8 + $0x3b0] sm:$0xff]
    %v522 = vld [vmem:[#allocation8 + $0x3b8] sm:$0xff]
    %v523 = vld [vmem:[#allocation8 + $0x3c0] sm:$0xff]
    %v524 = vld [vmem:[#allocation8 + $0x3c8] sm:$0xff]
    %v525 = vld [vmem:[#allocation8 + $0x3d0] sm:$0xff]
    %v526 = vld [vmem:[#allocation8 + $0x3d8] sm:$0xff]
    %v527 = vld [vmem:[#allocation8 + $0x3e0] sm:$0xff]
    %v528 = vld [vmem:[#allocation8 + $0x3e8] sm:$0xff]
    %v529 = vld [vmem:[#allocation8 + $0x3f0] sm:$0xff]
    %v530 = vld [vmem:[#allocation8 + $0x3f8] sm:$0xff]
    %v531 = vperm.slane %v103, 1
    %v532 = vperm.slane %v103, 5
    %v533 = vperm.slane %v104, 1
    %v534 = vperm.slane %v104, 5
    %v539 = vperm.slane %v531, 1
    %v540 = vperm.slane %v532, 1
    %v541 = vperm.slane %v533, 1
    %v542 = vperm.slane %v534, 1
    %v671 = vunpack.c.l.b16 %v403
    %v672 = vunpack.c.h.b16 %v403
    %v673 = vunpack.c.l.b16 %v404
    %v674 = vunpack.c.h.b16 %v404
    %v675 = vunpack.c.l.b16 %v405
    %v676 = vunpack.c.h.b16 %v405
    %v677 = vunpack.c.l.b16 %v406
    %v678 = vunpack.c.h.b16 %v406
    %v679 = vunpack.c.l.b16 %v407
    %v680 = vunpack.c.h.b16 %v407
    %v681 = vunpack.c.l.b16 %v408
    %v682 = vunpack.c.h.b16 %v408
    %v683 = vunpack.c.l.b16 %v409
    %v684 = vunpack.c.h.b16 %v409
    %v685 = vunpack.c.l.b16 %v410
    %v686 = vunpack.c.h.b16 %v410
    %v687 = vunpack.c.l.b16 %v411
    %v688 = vunpack.c.h.b16 %v411
    %v689 = vunpack.c.l.b16 %v412
    %v690 = vunpack.c.h.b16 %v412
    %v691 = vunpack.c.l.b16 %v413
    %v692 = vunpack.c.h.b16 %v413
    %v693 = vunpack.c.l.b16 %v414
    %v694 = vunpack.c.h.b16 %v414
    %v695 = vunpack.c.l.b16 %v415
    %v696 = vunpack.c.h.b16 %v415
    %v697 = vunpack.c.l.b16 %v416
    %v698 = vunpack.c.h.b16 %v416
    %v699 = vunpack.c.l.b16 %v417
    %v700 = vunpack.c.h.b16 %v417
    %v701 = vunpack.c.l.b16 %v418
    %v702 = vunpack.c.h.b16 %v418
    %v703 = vunpack.c.l.b16 %v419
    %v704 = vunpack.c.h.b16 %v419
    %v705 = vunpack.c.l.b16 %v420
    %v706 = vunpack.c.h.b16 %v420
    %v707 = vunpack.c.l.b16 %v421
    %v708 = vunpack.c.h.b16 %v421
    %v709 = vunpack.c.l.b16 %v422
    %v710 = vunpack.c.h.b16 %v422
    %v711 = vunpack.c.l.b16 %v423
    %v712 = vunpack.c.h.b16 %v423
    %v713 = vunpack.c.l.b16 %v424
    %v714 = vunpack.c.h.b16 %v424
    %v715 = vunpack.c.l.b16 %v425
    %v716 = vunpack.c.h.b16 %v425
    %v717 = vunpack.c.l.b16 %v426
    %v718 = vunpack.c.h.b16 %v426
    %v719 = vunpack.c.l.b16 %v427
    %v720 = vunpack.c.h.b16 %v427
    %v721 = vunpack.c.l.b16 %v428
    %v722 = vunpack.c.h.b16 %v428
    %v723 = vunpack.c.l.b16 %v429
    %v724 = vunpack.c.h.b16 %v429
    %v725 = vunpack.c.l.b16 %v430
    %v726 = vunpack.c.h.b16 %v430
    %v727 = vunpack.c.l.b16 %v431
    %v728 = vunpack.c.h.b16 %v431
    %v729 = vunpack.c.l.b16 %v432
    %v730 = vunpack.c.h.b16 %v432
    %v731 = vunpack.c.l.b16 %v433
    %v732 = vunpack.c.h.b16 %v433
    %v733 = vunpack.c.l.b16 %v434
    %v734 = vunpack.c.h.b16 %v434
    %v735 = vunpack.c.l.b16 %v435
    %v736 = vunpack.c.h.b16 %v435
    %v737 = vunpack.c.l.b16 %v436
    %v738 = vunpack.c.h.b16 %v436
    %v739 = vunpack.c.l.b16 %v437
    %v740 = vunpack.c.h.b16 %v437
    %v741 = vunpack.c.l.b16 %v438
    %v742 = vunpack.c.h.b16 %v438
    %v743 = vunpack.c.l.b16 %v439
    %v744 = vunpack.c.h.b16 %v439
    %v745 = vunpack.c.l.b16 %v440
    %v746 = vunpack.c.h.b16 %v440
    %v747 = vunpack.c.l.b16 %v441
    %v748 = vunpack.c.h.b16 %v441
    %v749 = vunpack.c.l.b16 %v442
    %v750 = vunpack.c.h.b16 %v442
    %v751 = vunpack.c.l.b16 %v443
    %v752 = vunpack.c.h.b16 %v443
    %v753 = vunpack.c.l.b16 %v444
    %v754 = vunpack.c.h.b16 %v444
    %v755 = vunpack.c.l.b16 %v445
    %v756 = vunpack.c.h.b16 %v445
    %v757 = vunpack.c.l.b16 %v446
    %v758 = vunpack.c.h.b16 %v446
    %v759 = vunpack.c.l.b16 %v447
    %v760 = vunpack.c.h.b16 %v447
    %v761 = vunpack.c.l.b16 %v448
    %v762 = vunpack.c.h.b16 %v448
    %v763 = vunpack.c.l.b16 %v449
    %v764 = vunpack.c.h.b16 %v449
    %v765 = vunpack.c.l.b16 %v450
    %v766 = vunpack.c.h.b16 %v450
    %v767 = vunpack.c.l.b16 %v451
    %v768 = vunpack.c.h.b16 %v451
    %v769 = vunpack.c.l.b16 %v452
    %v770 = vunpack.c.h.b16 %v452
    %v771 = vunpack.c.l.b16 %v453
    %v772 = vunpack.c.h.b16 %v453
    %v773 = vunpack.c.l.b16 %v454
    %v774 = vunpack.c.h.b16 %v454
    %v775 = vunpack.c.l.b16 %v455
    %v776 = vunpack.c.h.b16 %v455
    %v777 = vunpack.c.l.b16 %v456
    %v778 = vunpack.c.h.b16 %v456
    %v779 = vunpack.c.l.b16 %v457
    %v780 = vunpack.c.h.b16 %v457
    %v781 = vunpack.c.l.b16 %v458
    %v782 = vunpack.c.h.b16 %v458
    %v783 = vunpack.c.l.b16 %v459
    %v784 = vunpack.c.h.b16 %v459
    %v785 = vunpack.c.l.b16 %v460
    %v786 = vunpack.c.h.b16 %v460
    %v787 = vunpack.c.l.b16 %v461
    %v788 = vunpack.c.h.b16 %v461
    %v789 = vunpack.c.l.b16 %v462
    %v790 = vunpack.c.h.b16 %v462
    %v791 = vunpack.c.l.b16 %v463
    %v792 = vunpack.c.h.b16 %v463
    %v793 = vunpack.c.l.b16 %v464
    %v794 = vunpack.c.h.b16 %v464
    %v795 = vunpack.c.l.b16 %v465
    %v796 = vunpack.c.h.b16 %v465
    %v797 = vunpack.c.l.b16 %v466
    %v798 = vunpack.c.h.b16 %v466
    %v799 = vunpack.c.l.b16 %v467
    %v800 = vunpack.c.h.b16 %v467
    %v801 = vunpack.c.l.b16 %v468
    %v802 = vunpack.c.h.b16 %v468
    %v803 = vunpack.c.l.b16 %v469
    %v804 = vunpack.c.h.b16 %v469
    %v805 = vunpack.c.l.b16 %v470
    %v806 = vunpack.c.h.b16 %v470
    %v807 = vunpack.c.l.b16 %v471
    %v808 = vunpack.c.h.b16 %v471
    %v809 = vunpack.c.l.b16 %v472
    %v810 = vunpack.c.h.b16 %v472
    %v811 = vunpack.c.l.b16 %v473
    %v812 = vunpack.c.h.b16 %v473
    %v813 = vunpack.c.l.b16 %v474
    %v814 = vunpack.c.h.b16 %v474
    %v815 = vunpack.c.l.b16 %v475
    %v816 = vunpack.c.h.b16 %v475
    %v817 = vunpack.c.l.b16 %v476
    %v818 = vunpack.c.h.b16 %v476
    %v819 = vunpack.c.l.b16 %v477
    %v820 = vunpack.c.h.b16 %v477
    %v821 = vunpack.c.l.b16 %v478
    %v822 = vunpack.c.h.b16 %v478
    %v823 = vunpack.c.l.b16 %v479
    %v824 = vunpack.c.h.b16 %v479
    %v825 = vunpack.c.l.b16 %v480
    %v826 = vunpack.c.h.b16 %v480
    %v827 = vunpack.c.l.b16 %v481
    %v828 = vunpack.c.h.b16 %v481
    %v829 = vunpack.c.l.b16 %v482
    %v830 = vunpack.c.h.b16 %v482
    %v831 = vunpack.c.l.b16 %v483
    %v832 = vunpack.c.h.b16 %v483
    %v833 = vunpack.c.l.b16 %v484
    %v834 = vunpack.c.h.b16 %v484
    %v835 = vunpack.c.l.b16 %v485
    %v836 = vunpack.c.h.b16 %v485
    %v837 = vunpack.c.l.b16 %v486
    %v838 = vunpack.c.h.b16 %v486
    %v839 = vunpack.c.l.b16 %v487
    %v840 = vunpack.c.h.b16 %v487
    %v841 = vunpack.c.l.b16 %v488
    %v842 = vunpack.c.h.b16 %v488
    %v843 = vunpack.c.l.b16 %v489
    %v844 = vunpack.c.h.b16 %v489
    %v845 = vunpack.c.l.b16 %v490
    %v846 = vunpack.c.h.b16 %v490
    %v847 = vunpack.c.l.b16 %v491
    %v848 = vunpack.c.h.b16 %v491
    %v849 = vunpack.c.l.b16 %v492
    %v850 = vunpack.c.h.b16 %v492
    %v851 = vunpack.c.l.b16 %v493
    %v852 = vunpack.c.h.b16 %v493
    %v853 = vunpack.c.l.b16 %v494
    %v854 = vunpack.c.h.b16 %v494
    %v855 = vunpack.c.l.b16 %v495
    %v856 = vunpack.c.h.b16 %v495
    %v857 = vunpack.c.l.b16 %v496
    %v858 = vunpack.c.h.b16 %v496
    %v859 = vunpack.c.l.b16 %v497
    %v860 = vunpack.c.h.b16 %v497
    %v861 = vunpack.c.l.b16 %v498
    %v862 = vunpack.c.h.b16 %v498
    %v863 = vunpack.c.l.b16 %v499
    %v864 = vunpack.c.h.b16 %v499
    %v865 = vunpack.c.l.b16 %v500
    %v866 = vunpack.c.h.b16 %v500
    %v867 = vunpack.c.l.b16 %v501
    %v868 = vunpack.c.h.b16 %v501
    %v869 = vunpack.c.l.b16 %v502
    %v870 = vunpack.c.h.b16 %v502
    %v871 = vunpack.c.l.b16 %v503
    %v872 = vunpack.c.h.b16 %v503
    %v873 = vunpack.c.l.b16 %v504
    %v874 = vunpack.c.h.b16 %v504
    %v875 = vunpack.c.l.b16 %v505
    %v876 = vunpack.c.h.b16 %v505
    %v877 = vunpack.c.l.b16 %v506
    %v878 = vunpack.c.h.b16 %v506
    %v879 = vunpack.c.l.b16 %v507
    %v880 = vunpack.c.h.b16 %v507
    %v881 = vunpack.c.l.b16 %v508
    %v882 = vunpack.c.h.b16 %v508
    %v883 = vunpack.c.l.b16 %v509
    %v884 = vunpack.c.h.b16 %v509
    %v885 = vunpack.c.l.b16 %v510
    %v886 = vunpack.c.h.b16 %v510
    %v887 = vunpack.c.l.b16 %v511
    %v888 = vunpack.c.h.b16 %v511
    %v889 = vunpack.c.l.b16 %v512
    %v890 = vunpack.c.h.b16 %v512
    %v891 = vunpack.c.l.b16 %v513
    %v892 = vunpack.c.h.b16 %v513
    %v893 = vunpack.c.l.b16 %v514
    %v894 = vunpack.c.h.b16 %v514
    %v895 = vunpack.c.l.b16 %v515
    %v896 = vunpack.c.h.b16 %v515
    %v897 = vunpack.c.l.b16 %v516
    %v898 = vunpack.c.h.b16 %v516
    %v899 = vunpack.c.l.b16 %v517
    %v900 = vunpack.c.h.b16 %v517
    %v901 = vunpack.c.l.b16 %v518
    %v902 = vunpack.c.h.b16 %v518
    %v903 = vunpack.c.l.b16 %v519
    %v904 = vunpack.c.h.b16 %v519
    %v905 = vunpack.c.l.b16 %v520
    %v906 = vunpack.c.h.b16 %v520
    %v907 = vunpack.c.l.b16 %v521
    %v908 = vunpack.c.h.b16 %v521
    %v909 = vunpack.c.l.b16 %v522
    %v910 = vunpack.c.h.b16 %v522
    %v911 = vunpack.c.l.b16 %v523
    %v912 = vunpack.c.h.b16 %v523
    %v913 = vunpack.c.l.b16 %v524
    %v914 = vunpack.c.h.b16 %v524
    %v915 = vunpack.c.l.b16 %v525
    %v916 = vunpack.c.h.b16 %v525
    %v917 = vunpack.c.l.b16 %v526
    %v918 = vunpack.c.h.b16 %v526
    %v919 = vunpack.c.l.b16 %v527
    %v920 = vunpack.c.h.b16 %v527
    %v921 = vunpack.c.l.b16 %v528
    %v922 = vunpack.c.h.b16 %v528
    %v923 = vunpack.c.l.b16 %v529
    %v924 = vunpack.c.h.b16 %v529
    %v925 = vunpack.c.l.b16 %v530
    %v926 = vunpack.c.h.b16 %v530
    %v927 = vpack.c.b16 %v675, %v671
    %v928 = vpack.c.b16 %v676, %v672
    %v929 = vpack.c.b16 %v677, %v673
    %v930 = vpack.c.b16 %v678, %v674
    %v931 = vpack.c.b16 %v683, %v679
    %v932 = vpack.c.b16 %v684, %v680
    %v933 = vpack.c.b16 %v685, %v681
    %v934 = vpack.c.b16 %v686, %v682
    %v935 = vpack.c.b16 %v691, %v687
    %v936 = vpack.c.b16 %v692, %v688
    %v937 = vpack.c.b16 %v693, %v689
    %v938 = vpack.c.b16 %v694, %v690
    %v939 = vpack.c.b16 %v699, %v695
    %v940 = vpack.c.b16 %v700, %v696
    %v941 = vpack.c.b16 %v701, %v697
    %v942 = vpack.c.b16 %v702, %v698
    %v943 = vpack.c.b16 %v707, %v703
    %v944 = vpack.c.b16 %v708, %v704
    %v945 = vpack.c.b16 %v709, %v705
    %v946 = vpack.c.b16 %v710, %v706
    %v947 = vpack.c.b16 %v715, %v711
    %v948 = vpack.c.b16 %v716, %v712
    %v949 = vpack.c.b16 %v717, %v713
    %v950 = vpack.c.b16 %v718, %v714
    %v951 = vpack.c.b16 %v723, %v719
    %v952 = vpack.c.b16 %v724, %v720
    %v953 = vpack.c.b16 %v725, %v721
    %v954 = vpack.c.b16 %v726, %v722
    %v955 = vpack.c.b16 %v731, %v727
    %v956 = vpack.c.b16 %v732, %v728
    %v957 = vpack.c.b16 %v733, %v729
    %v958 = vpack.c.b16 %v734, %v730
    %v959 = vpack.c.b16 %v739, %v735
    %v960 = vpack.c.b16 %v740, %v736
    %v961 = vpack.c.b16 %v741, %v737
    %v962 = vpack.c.b16 %v742, %v738
    %v963 = vpack.c.b16 %v747, %v743
    %v964 = vpack.c.b16 %v748, %v744
    %v965 = vpack.c.b16 %v749, %v745
    %v966 = vpack.c.b16 %v750, %v746
    %v967 = vpack.c.b16 %v755, %v751
    %v968 = vpack.c.b16 %v756, %v752
    %v969 = vpack.c.b16 %v757, %v753
    %v970 = vpack.c.b16 %v758, %v754
    %v971 = vpack.c.b16 %v763, %v759
    %v972 = vpack.c.b16 %v764, %v760
    %v973 = vpack.c.b16 %v765, %v761
    %v974 = vpack.c.b16 %v766, %v762
    %v975 = vpack.c.b16 %v771, %v767
    %v976 = vpack.c.b16 %v772, %v768
    %v977 = vpack.c.b16 %v773, %v769
    %v978 = vpack.c.b16 %v774, %v770
    %v979 = vpack.c.b16 %v779, %v775
    %v980 = vpack.c.b16 %v780, %v776
    %v981 = vpack.c.b16 %v781, %v777
    %v982 = vpack.c.b16 %v782, %v778
    %v983 = vpack.c.b16 %v787, %v783
    %v984 = vpack.c.b16 %v788, %v784
    %v985 = vpack.c.b16 %v789, %v785
    %v986 = vpack.c.b16 %v790, %v786
    %v987 = vpack.c.b16 %v795, %v791
    %v988 = vpack.c.b16 %v796, %v792
    %v989 = vpack.c.b16 %v797, %v793
    %v990 = vpack.c.b16 %v798, %v794
    %v991 = vpack.c.b16 %v803, %v799
    %v992 = vpack.c.b16 %v804, %v800
    %v993 = vpack.c.b16 %v805, %v801
    %v994 = vpack.c.b16 %v806, %v802
    %v995 = vpack.c.b16 %v811, %v807
    %v996 = vpack.c.b16 %v812, %v808
    %v997 = vpack.c.b16 %v813, %v809
    %v998 = vpack.c.b16 %v814, %v810
    %v999 = vpack.c.b16 %v819, %v815
    %v1000 = vpack.c.b16 %v820, %v816
    %v1001 = vpack.c.b16 %v821, %v817
    %v1002 = vpack.c.b16 %v822, %v818
    %v1003 = vpack.c.b16 %v827, %v823
    %v1004 = vpack.c.b16 %v828, %v824
    %v1005 = vpack.c.b16 %v829, %v825
    %v1006 = vpack.c.b16 %v830, %v826
    %v1007 = vpack.c.b16 %v835, %v831
    %v1008 = vpack.c.b16 %v836, %v832
    %v1009 = vpack.c.b16 %v837, %v833
    %v1010 = vpack.c.b16 %v838, %v834
    %v1011 = vpack.c.b16 %v843, %v839
    %v1012 = vpack.c.b16 %v844, %v840
    %v1013 = vpack.c.b16 %v845, %v841
    %v1014 = vpack.c.b16 %v846, %v842
    %v1015 = vpack.c.b16 %v851, %v847
    %v1016 = vpack.c.b16 %v852, %v848
    %v1017 = vpack.c.b16 %v853, %v849
    %v1018 = vpack.c.b16 %v854, %v850
    %v1019 = vpack.c.b16 %v859, %v855
    %v1020 = vpack.c.b16 %v860, %v856
    %v1021 = vpack.c.b16 %v861, %v857
    %v1022 = vpack.c.b16 %v862, %v858
    %v1023 = vpack.c.b16 %v867, %v863
    %v1024 = vpack.c.b16 %v868, %v864
    %v1025 = vpack.c.b16 %v869, %v865
    %v1026 = vpack.c.b16 %v870, %v866
    %v1027 = vpack.c.b16 %v875, %v871
    %v1028 = vpack.c.b16 %v876, %v872
    %v1029 = vpack.c.b16 %v877, %v873
    %v1030 = vpack.c.b16 %v878, %v874
    %v1031 = vpack.c.b16 %v883, %v879
    %v1032 = vpack.c.b16 %v884, %v880
    %v1033 = vpack.c.b16 %v885, %v881
    %v1034 = vpack.c.b16 %v886, %v882
    %v1035 = vpack.c.b16 %v891, %v887
    %v1036 = vpack.c.b16 %v892, %v888
    %v1037 = vpack.c.b16 %v893, %v889
    %v1038 = vpack.c.b16 %v894, %v890
    %v1039 = vpack.c.b16 %v899, %v895
    %v1040 = vpack.c.b16 %v900, %v896
    %v1041 = vpack.c.b16 %v901, %v897
    %v1042 = vpack.c.b16 %v902, %v898
    %v1043 = vpack.c.b16 %v907, %v903
    %v1044 = vpack.c.b16 %v908, %v904
    %v1045 = vpack.c.b16 %v909, %v905
    %v1046 = vpack.c.b16 %v910, %v906
    %v1047 = vpack.c.b16 %v915, %v911
    %v1048 = vpack.c.b16 %v916, %v912
    %v1049 = vpack.c.b16 %v917, %v913
    %v1050 = vpack.c.b16 %v918, %v914
    %v1051 = vpack.c.b16 %v923, %v919
    %v1052 = vpack.c.b16 %v924, %v920
    %v1053 = vpack.c.b16 %v925, %v921
    %v1054 = vpack.c.b16 %v926, %v922
    %1183 = vmatpush.bf16.msra.mxu0 %v955
    %1184 = vmatpush.bf16.msra.mxu0 %v951
    %1185 = vmatpush.bf16.msra.mxu0 %v947
    %1186 = vmatpush.bf16.msra.mxu0 %v943
    %1187 = vmatpush.bf16.msra.mxu0 %v939
    %1188 = vmatpush.bf16.msra.mxu0 %v935
    %1189 = vmatpush.bf16.msra.mxu0 %v931
    %1190 = vmatpush.bf16.msra.mxu0 %v927
    %1191 = vmatmul.bf16.gmra.mxu0 %v399
    %v1192 = vpop.f32.mrf.mxu0
    %v1193 = vadd.f32 %v539, %v1192
    %v1194 = vpop.f32.mrf.mxu0
    %v1195 = vadd.f32 %v539, %v1194
    %1196 = vdwg.mxu0
    %1197 = vmatpush.bf16.msra.mxu0 %v987
    %1198 = vmatpush.bf16.msra.mxu0 %v983
    %1199 = vmatpush.bf16.msra.mxu0 %v979
    %1200 = vmatpush.bf16.msra.mxu0 %v975
    %1201 = vmatpush.bf16.msra.mxu0 %v971
    %1202 = vmatpush.bf16.msra.mxu0 %v967
    %1203 = vmatpush.bf16.msra.mxu0 %v963
    %1204 = vmatpush.bf16.msra.mxu0 %v959
    %1205 = vmatmul.bf16.gmra.mxu0 %v400
    %v1206 = vpop.f32.mrf.mxu0
    %v1207 = vadd.f32 %v1193, %v1206
    %v1208 = vpop.f32.mrf.mxu0
    %v1209 = vadd.f32 %v1195, %v1208
    %1210 = vdwg.mxu0
    %1211 = vmatpush.bf16.msra.mxu0 %v1019
    %1212 = vmatpush.bf16.msra.mxu0 %v1015
    %1213 = vmatpush.bf16.msra.mxu0 %v1011
    %1214 = vmatpush.bf16.msra.mxu0 %v1007
    %1215 = vmatpush.bf16.msra.mxu0 %v1003
    %1216 = vmatpush.bf16.msra.mxu0 %v999
    %1217 = vmatpush.bf16.msra.mxu0 %v995
    %1218 = vmatpush.bf16.msra.mxu0 %v991
    %1219 = vmatmul.bf16.gmra.mxu0 %v401
    %v1220 = vpop.f32.mrf.mxu0
    %v1221 = vadd.f32 %v1207, %v1220
    %v1222 = vpop.f32.mrf.mxu0
    %v1223 = vadd.f32 %v1209, %v1222
    %1224 = vdwg.mxu0
    %1225 = vmatpush.bf16.msra.mxu0 %v1051
    %1226 = vmatpush.bf16.msra.mxu0 %v1047
    %1227 = vmatpush.bf16.msra.mxu0 %v1043
    %1228 = vmatpush.bf16.msra.mxu0 %v1039
    %1229 = vmatpush.bf16.msra.mxu0 %v1035
    %1230 = vmatpush.bf16.msra.mxu0 %v1031
    %1231 = vmatpush.bf16.msra.mxu0 %v1027
    %1232 = vmatpush.bf16.msra.mxu0 %v1023
    %1233 = vmatmul.bf16.gmra.mxu0 %v402
    %v1234 = vpop.f32.mrf.mxu0
    %v1235 = vadd.f32 %v1221, %v1234
    %v1236 = vpop.f32.mrf.mxu0
    %v1237 = vadd.f32 %v1223, %v1236
    %1238 = vdwg.mxu0
    %1239 = vmatpush.bf16.msra.mxu0 %v956
    %1240 = vmatpush.bf16.msra.mxu0 %v952
    %1241 = vmatpush.bf16.msra.mxu0 %v948
    %1242 = vmatpush.bf16.msra.mxu0 %v944
    %1243 = vmatpush.bf16.msra.mxu0 %v940
    %1244 = vmatpush.bf16.msra.mxu0 %v936
    %1245 = vmatpush.bf16.msra.mxu0 %v932
    %1246 = vmatpush.bf16.msra.mxu0 %v928
    %1247 = vmatmul.bf16.gmra.mxu0 %v399
    %v1248 = vpop.f32.mrf.mxu0
    %v1249 = vadd.f32 %v540, %v1248
    %v1250 = vpop.f32.mrf.mxu0
    %v1251 = vadd.f32 %v540, %v1250
    %1252 = vdwg.mxu0
    %1253 = vmatpush.bf16.msra.mxu0 %v988
    %1254 = vmatpush.bf16.msra.mxu0 %v984
    %1255 = vmatpush.bf16.msra.mxu0 %v980
    %1256 = vmatpush.bf16.msra.mxu0 %v976
    %1257 = vmatpush.bf16.msra.mxu0 %v972
    %1258 = vmatpush.bf16.msra.mxu0 %v968
    %1259 = vmatpush.bf16.msra.mxu0 %v964
    %1260 = vmatpush.bf16.msra.mxu0 %v960
    %1261 = vmatmul.bf16.gmra.mxu0 %v400
    %v1262 = vpop.f32.mrf.mxu0
    %v1263 = vadd.f32 %v1249, %v1262
    %v1264 = vpop.f32.mrf.mxu0
    %v1265 = vadd.f32 %v1251, %v1264
    %1266 = vdwg.mxu0
    %1267 = vmatpush.bf16.msra.mxu0 %v1020
    %1268 = vmatpush.bf16.msra.mxu0 %v1016
    %1269 = vmatpush.bf16.msra.mxu0 %v1012
    %1270 = vmatpush.bf16.msra.mxu0 %v1008
    %1271 = vmatpush.bf16.msra.mxu0 %v1004
    %1272 = vmatpush.bf16.msra.mxu0 %v1000
    %1273 = vmatpush.bf16.msra.mxu0 %v996
    %1274 = vmatpush.bf16.msra.mxu0 %v992
    %1275 = vmatmul.bf16.gmra.mxu0 %v401
    %v1276 = vpop.f32.mrf.mxu0
    %v1277 = vadd.f32 %v1263, %v1276
    %v1278 = vpop.f32.mrf.mxu0
    %v1279 = vadd.f32 %v1265, %v1278
    %1280 = vdwg.mxu0
    %1281 = vmatpush.bf16.msra.mxu0 %v1052
    %1282 = vmatpush.bf16.msra.mxu0 %v1048
    %1283 = vmatpush.bf16.msra.mxu0 %v1044
    %1284 = vmatpush.bf16.msra.mxu0 %v1040
    %1285 = vmatpush.bf16.msra.mxu0 %v1036
    %1286 = vmatpush.bf16.msra.mxu0 %v1032
    %1287 = vmatpush.bf16.msra.mxu0 %v1028
    %1288 = vmatpush.bf16.msra.mxu0 %v1024
    %1289 = vmatmul.bf16.gmra.mxu0 %v402
    %v1290 = vpop.f32.mrf.mxu0
    %v1291 = vadd.f32 %v1277, %v1290
    %v1292 = vpop.f32.mrf.mxu0
    %v1293 = vadd.f32 %v1279, %v1292
    %1294 = vdwg.mxu0
    %1295 = vmatpush.bf16.msra.mxu0 %v957
    %1296 = vmatpush.bf16.msra.mxu0 %v953
    %1297 = vmatpush.bf16.msra.mxu0 %v949
    %1298 = vmatpush.bf16.msra.mxu0 %v945
    %1299 = vmatpush.bf16.msra.mxu0 %v941
    %1300 = vmatpush.bf16.msra.mxu0 %v937
    %1301 = vmatpush.bf16.msra.mxu0 %v933
    %1302 = vmatpush.bf16.msra.mxu0 %v929
    %1303 = vmatmul.bf16.gmra.mxu0 %v399
    %v1304 = vpop.f32.mrf.mxu0
    %v1305 = vadd.f32 %v541, %v1304
    %v1306 = vpop.f32.mrf.mxu0
    %v1307 = vadd.f32 %v541, %v1306
    %1308 = vdwg.mxu0
    %1309 = vmatpush.bf16.msra.mxu0 %v989
    %1310 = vmatpush.bf16.msra.mxu0 %v985
    %1311 = vmatpush.bf16.msra.mxu0 %v981
    %1312 = vmatpush.bf16.msra.mxu0 %v977
    %1313 = vmatpush.bf16.msra.mxu0 %v973
    %1314 = vmatpush.bf16.msra.mxu0 %v969
    %1315 = vmatpush.bf16.msra.mxu0 %v965
    %1316 = vmatpush.bf16.msra.mxu0 %v961
    %1317 = vmatmul.bf16.gmra.mxu0 %v400
    %v1318 = vpop.f32.mrf.mxu0
    %v1319 = vadd.f32 %v1305, %v1318
    %v1320 = vpop.f32.mrf.mxu0
    %v1321 = vadd.f32 %v1307, %v1320
    %1322 = vdwg.mxu0
    %1323 = vmatpush.bf16.msra.mxu0 %v1021
    %1324 = vmatpush.bf16.msra.mxu0 %v1017
    %1325 = vmatpush.bf16.msra.mxu0 %v1013
    %1326 = vmatpush.bf16.msra.mxu0 %v1009
    %1327 = vmatpush.bf16.msra.mxu0 %v1005
    %1328 = vmatpush.bf16.msra.mxu0 %v1001
    %1329 = vmatpush.bf16.msra.mxu0 %v997
    %1330 = vmatpush.bf16.msra.mxu0 %v993
    %1331 = vmatmul.bf16.gmra.mxu0 %v401
    %v1332 = vpop.f32.mrf.mxu0
    %v1333 = vadd.f32 %v1319, %v1332
    %v1334 = vpop.f32.mrf.mxu0
    %v1335 = vadd.f32 %v1321, %v1334
    %1336 = vdwg.mxu0
    %1337 = vmatpush.bf16.msra.mxu0 %v1053
    %1338 = vmatpush.bf16.msra.mxu0 %v1049
    %1339 = vmatpush.bf16.msra.mxu0 %v1045
    %1340 = vmatpush.bf16.msra.mxu0 %v1041
    %1341 = vmatpush.bf16.msra.mxu0 %v1037
    %1342 = vmatpush.bf16.msra.mxu0 %v1033
    %1343 = vmatpush.bf16.msra.mxu0 %v1029
    %1344 = vmatpush.bf16.msra.mxu0 %v1025
    %1345 = vmatmul.bf16.gmra.mxu0 %v402
    %v1346 = vpop.f32.mrf.mxu0
    %v1347 = vadd.f32 %v1333, %v1346
    %v1348 = vpop.f32.mrf.mxu0
    %v1349 = vadd.f32 %v1335, %v1348
    %1350 = vdwg.mxu0
    %1351 = vmatpush.bf16.msra.mxu0 %v958
    %1352 = vmatpush.bf16.msra.mxu0 %v954
    %1353 = vmatpush.bf16.msra.mxu0 %v950
    %1354 = vmatpush.bf16.msra.mxu0 %v946
    %1355 = vmatpush.bf16.msra.mxu0 %v942
    %1356 = vmatpush.bf16.msra.mxu0 %v938
    %1357 = vmatpush.bf16.msra.mxu0 %v934
    %1358 = vmatpush.bf16.msra.mxu0 %v930
    %1359 = vmatmul.bf16.gmra.mxu0 %v399
    %v1360 = vpop.f32.mrf.mxu0
    %v1361 = vadd.f32 %v542, %v1360
    %v1362 = vpop.f32.mrf.mxu0
    %v1363 = vadd.f32 %v542, %v1362
    %1364 = vdwg.mxu0
    %1365 = vmatpush.bf16.msra.mxu0 %v990
    %1366 = vmatpush.bf16.msra.mxu0 %v986
    %1367 = vmatpush.bf16.msra.mxu0 %v982
    %1368 = vmatpush.bf16.msra.mxu0 %v978
    %1369 = vmatpush.bf16.msra.mxu0 %v974
    %1370 = vmatpush.bf16.msra.mxu0 %v970
    %1371 = vmatpush.bf16.msra.mxu0 %v966
    %1372 = vmatpush.bf16.msra.mxu0 %v962
    %1373 = vmatmul.bf16.gmra.mxu0 %v400
    %v1374 = vpop.f32.mrf.mxu0
    %v1375 = vadd.f32 %v1361, %v1374
    %v1376 = vpop.f32.mrf.mxu0
    %v1377 = vadd.f32 %v1363, %v1376
    %1378 = vdwg.mxu0
    %1379 = vmatpush.bf16.msra.mxu0 %v1022
    %1380 = vmatpush.bf16.msra.mxu0 %v1018
    %1381 = vmatpush.bf16.msra.mxu0 %v1014
    %1382 = vmatpush.bf16.msra.mxu0 %v1010
    %1383 = vmatpush.bf16.msra.mxu0 %v1006
    %1384 = vmatpush.bf16.msra.mxu0 %v1002
    %1385 = vmatpush.bf16.msra.mxu0 %v998
    %1386 = vmatpush.bf16.msra.mxu0 %v994
    %1387 = vmatmul.bf16.gmra.mxu0 %v401
    %v1388 = vpop.f32.mrf.mxu0
    %v1389 = vadd.f32 %v1375, %v1388
    %v1390 = vpop.f32.mrf.mxu0
    %v1391 = vadd.f32 %v1377, %v1390
    %1392 = vdwg.mxu0
    %1393 = vmatpush.bf16.msra.mxu0 %v1054
    %1394 = vmatpush.bf16.msra.mxu0 %v1050
    %1395 = vmatpush.bf16.msra.mxu0 %v1046
    %1396 = vmatpush.bf16.msra.mxu0 %v1042
    %1397 = vmatpush.bf16.msra.mxu0 %v1038
    %1398 = vmatpush.bf16.msra.mxu0 %v1034
    %1399 = vmatpush.bf16.msra.mxu0 %v1030
    %1400 = vmatpush.bf16.msra.mxu0 %v1026
    %1401 = vmatmul.bf16.gmra.mxu0 %v402
    %v1402 = vpop.f32.mrf.mxu0
    %v1403 = vadd.f32 %v1389, %v1402
    %v1404 = vpop.f32.mrf.mxu0
    %v1405 = vadd.f32 %v1391, %v1404
    %1406 = vdwg.mxu0
    %vm1407 = vcmp.gt.f32.partialorder %v1235, 0.0
    %vm1408 = vcmp.gt.f32.partialorder %v1291, 0.0
    %vm1409 = vcmp.gt.f32.partialorder %v1347, 0.0
    %vm1410 = vcmp.gt.f32.partialorder %v1403, 0.0
    %vm1411 = vcmp.gt.f32.partialorder %v1237, 0.0
    %vm1412 = vcmp.gt.f32.partialorder %v1293, 0.0
    %vm1413 = vcmp.gt.f32.partialorder %v1349, 0.0
    %vm1414 = vcmp.gt.f32.partialorder %v1405, 0.0
    %v1415 = vmul.f32 %v1235, 0.2
    %v1416 = vmul.f32 %v1291, 0.2
    %v1417 = vmul.f32 %v1347, 0.2
    %v1418 = vmul.f32 %v1403, 0.2
    %v1419 = vmul.f32 %v1237, 0.2
    %v1420 = vmul.f32 %v1293, 0.2
    %v1421 = vmul.f32 %v1349, 0.2
    %v1422 = vmul.f32 %v1405, 0.2
    %v1423 = vsel %vm1407, %v1235, %v1415
    %v1424 = vsel %vm1408, %v1291, %v1416
    %v1425 = vsel %vm1409, %v1347, %v1417
    %v1426 = vsel %vm1410, %v1403, %v1418
    %v1427 = vsel %vm1411, %v1237, %v1419
    %v1428 = vsel %vm1412, %v1293, %v1420
    %v1429 = vsel %vm1413, %v1349, %v1421
    %v1430 = vsel %vm1414, %v1405, %v1422
    %v1431 = vpack.c.bf16 %v1427, %v1423
    %v1432 = vpack.c.bf16 %v1428, %v1424
    %v1433 = vpack.c.bf16 %v1429, %v1425
    %v1434 = vpack.c.bf16 %v1430, %v1426
    %v1435 = vld [vmem:[#allocation10] sm:$0xff]
    %v1436 = vld [vmem:[#allocation10 + $0x8] sm:$0xff]
    %v1437 = vld [vmem:[#allocation10 + $0x10] sm:$0xff]
    %v1438 = vld [vmem:[#allocation10 + $0x18] sm:$0xff]
    %v1439 = vld [vmem:[#allocation10 + $0x20] sm:$0xff]
    %v1440 = vld [vmem:[#allocation10 + $0x28] sm:$0xff]
    %v1441 = vld [vmem:[#allocation10 + $0x30] sm:$0xff]
    %v1442 = vld [vmem:[#allocation10 + $0x38] sm:$0xff]
    %v1443 = vld [vmem:[#allocation10 + $0x40] sm:$0xff]
    %v1444 = vld [vmem:[#allocation10 + $0x48] sm:$0xff]
    %v1445 = vld [vmem:[#allocation10 + $0x50] sm:$0xff]
    %v1446 = vld [vmem:[#allocation10 + $0x58] sm:$0xff]
    %v1447 = vld [vmem:[#allocation10 + $0x60] sm:$0xff]
    %v1448 = vld [vmem:[#allocation10 + $0x68] sm:$0xff]
    %v1449 = vld [vmem:[#allocation10 + $0x70] sm:$0xff]
    %v1450 = vld [vmem:[#allocation10 + $0x78] sm:$0xff]
    %v1451 = vld [vmem:[#allocation10 + $0x80] sm:$0xff]
    %v1452 = vld [vmem:[#allocation10 + $0x88] sm:$0xff]
    %v1453 = vld [vmem:[#allocation10 + $0x90] sm:$0xff]
    %v1454 = vld [vmem:[#allocation10 + $0x98] sm:$0xff]
    %v1455 = vld [vmem:[#allocation10 + $0xa0] sm:$0xff]
    %v1456 = vld [vmem:[#allocation10 + $0xa8] sm:$0xff]
    %v1457 = vld [vmem:[#allocation10 + $0xb0] sm:$0xff]
    %v1458 = vld [vmem:[#allocation10 + $0xb8] sm:$0xff]
    %v1459 = vld [vmem:[#allocation10 + $0xc0] sm:$0xff]
    %v1460 = vld [vmem:[#allocation10 + $0xc8] sm:$0xff]
    %v1461 = vld [vmem:[#allocation10 + $0xd0] sm:$0xff]
    %v1462 = vld [vmem:[#allocation10 + $0xd8] sm:$0xff]
    %v1463 = vld [vmem:[#allocation10 + $0xe0] sm:$0xff]
    %v1464 = vld [vmem:[#allocation10 + $0xe8] sm:$0xff]
    %v1465 = vld [vmem:[#allocation10 + $0xf0] sm:$0xff]
    %v1466 = vld [vmem:[#allocation10 + $0xf8] sm:$0xff]
    %v1467 = vld [vmem:[#allocation10 + $0x100] sm:$0xff]
    %v1468 = vld [vmem:[#allocation10 + $0x108] sm:$0xff]
    %v1469 = vld [vmem:[#allocation10 + $0x110] sm:$0xff]
    %v1470 = vld [vmem:[#allocation10 + $0x118] sm:$0xff]
    %v1471 = vld [vmem:[#allocation10 + $0x120] sm:$0xff]
    %v1472 = vld [vmem:[#allocation10 + $0x128] sm:$0xff]
    %v1473 = vld [vmem:[#allocation10 + $0x130] sm:$0xff]
    %v1474 = vld [vmem:[#allocation10 + $0x138] sm:$0xff]
    %v1475 = vld [vmem:[#allocation10 + $0x140] sm:$0xff]
    %v1476 = vld [vmem:[#allocation10 + $0x148] sm:$0xff]
    %v1477 = vld [vmem:[#allocation10 + $0x150] sm:$0xff]
    %v1478 = vld [vmem:[#allocation10 + $0x158] sm:$0xff]
    %v1479 = vld [vmem:[#allocation10 + $0x160] sm:$0xff]
    %v1480 = vld [vmem:[#allocation10 + $0x168] sm:$0xff]
    %v1481 = vld [vmem:[#allocation10 + $0x170] sm:$0xff]
    %v1482 = vld [vmem:[#allocation10 + $0x178] sm:$0xff]
    %v1483 = vld [vmem:[#allocation10 + $0x180] sm:$0xff]
    %v1484 = vld [vmem:[#allocation10 + $0x188] sm:$0xff]
    %v1485 = vld [vmem:[#allocation10 + $0x190] sm:$0xff]
    %v1486 = vld [vmem:[#allocation10 + $0x198] sm:$0xff]
    %v1487 = vld [vmem:[#allocation10 + $0x1a0] sm:$0xff]
    %v1488 = vld [vmem:[#allocation10 + $0x1a8] sm:$0xff]
    %v1489 = vld [vmem:[#allocation10 + $0x1b0] sm:$0xff]
    %v1490 = vld [vmem:[#allocation10 + $0x1b8] sm:$0xff]
    %v1491 = vld [vmem:[#allocation10 + $0x1c0] sm:$0xff]
    %v1492 = vld [vmem:[#allocation10 + $0x1c8] sm:$0xff]
    %v1493 = vld [vmem:[#allocation10 + $0x1d0] sm:$0xff]
    %v1494 = vld [vmem:[#allocation10 + $0x1d8] sm:$0xff]
    %v1495 = vld [vmem:[#allocation10 + $0x1e0] sm:$0xff]
    %v1496 = vld [vmem:[#allocation10 + $0x1e8] sm:$0xff]
    %v1497 = vld [vmem:[#allocation10 + $0x1f0] sm:$0xff]
    %v1498 = vld [vmem:[#allocation10 + $0x1f8] sm:$0xff]
    %v1499 = vld [vmem:[#allocation10 + $0x200] sm:$0xff]
    %v1500 = vld [vmem:[#allocation10 + $0x208] sm:$0xff]
    %v1501 = vld [vmem:[#allocation10 + $0x210] sm:$0xff]
    %v1502 = vld [vmem:[#allocation10 + $0x218] sm:$0xff]
    %v1503 = vld [vmem:[#allocation10 + $0x220] sm:$0xff]
    %v1504 = vld [vmem:[#allocation10 + $0x228] sm:$0xff]
    %v1505 = vld [vmem:[#allocation10 + $0x230] sm:$0xff]
    %v1506 = vld [vmem:[#allocation10 + $0x238] sm:$0xff]
    %v1507 = vld [vmem:[#allocation10 + $0x240] sm:$0xff]
    %v1508 = vld [vmem:[#allocation10 + $0x248] sm:$0xff]
    %v1509 = vld [vmem:[#allocation10 + $0x250] sm:$0xff]
    %v1510 = vld [vmem:[#allocation10 + $0x258] sm:$0xff]
    %v1511 = vld [vmem:[#allocation10 + $0x260] sm:$0xff]
    %v1512 = vld [vmem:[#allocation10 + $0x268] sm:$0xff]
    %v1513 = vld [vmem:[#allocation10 + $0x270] sm:$0xff]
    %v1514 = vld [vmem:[#allocation10 + $0x278] sm:$0xff]
    %v1515 = vld [vmem:[#allocation10 + $0x280] sm:$0xff]
    %v1516 = vld [vmem:[#allocation10 + $0x288] sm:$0xff]
    %v1517 = vld [vmem:[#allocation10 + $0x290] sm:$0xff]
    %v1518 = vld [vmem:[#allocation10 + $0x298] sm:$0xff]
    %v1519 = vld [vmem:[#allocation10 + $0x2a0] sm:$0xff]
    %v1520 = vld [vmem:[#allocation10 + $0x2a8] sm:$0xff]
    %v1521 = vld [vmem:[#allocation10 + $0x2b0] sm:$0xff]
    %v1522 = vld [vmem:[#allocation10 + $0x2b8] sm:$0xff]
    %v1523 = vld [vmem:[#allocation10 + $0x2c0] sm:$0xff]
    %v1524 = vld [vmem:[#allocation10 + $0x2c8] sm:$0xff]
    %v1525 = vld [vmem:[#allocation10 + $0x2d0] sm:$0xff]
    %v1526 = vld [vmem:[#allocation10 + $0x2d8] sm:$0xff]
    %v1527 = vld [vmem:[#allocation10 + $0x2e0] sm:$0xff]
    %v1528 = vld [vmem:[#allocation10 + $0x2e8] sm:$0xff]
    %v1529 = vld [vmem:[#allocation10 + $0x2f0] sm:$0xff]
    %v1530 = vld [vmem:[#allocation10 + $0x2f8] sm:$0xff]
    %v1531 = vld [vmem:[#allocation10 + $0x300] sm:$0xff]
    %v1532 = vld [vmem:[#allocation10 + $0x308] sm:$0xff]
    %v1533 = vld [vmem:[#allocation10 + $0x310] sm:$0xff]
    %v1534 = vld [vmem:[#allocation10 + $0x318] sm:$0xff]
    %v1535 = vld [vmem:[#allocation10 + $0x320] sm:$0xff]
    %v1536 = vld [vmem:[#allocation10 + $0x328] sm:$0xff]
    %v1537 = vld [vmem:[#allocation10 + $0x330] sm:$0xff]
    %v1538 = vld [vmem:[#allocation10 + $0x338] sm:$0xff]
    %v1539 = vld [vmem:[#allocation10 + $0x340] sm:$0xff]
    %v1540 = vld [vmem:[#allocation10 + $0x348] sm:$0xff]
    %v1541 = vld [vmem:[#allocation10 + $0x350] sm:$0xff]
    %v1542 = vld [vmem:[#allocation10 + $0x358] sm:$0xff]
    %v1543 = vld [vmem:[#allocation10 + $0x360] sm:$0xff]
    %v1544 = vld [vmem:[#allocation10 + $0x368] sm:$0xff]
    %v1545 = vld [vmem:[#allocation10 + $0x370] sm:$0xff]
    %v1546 = vld [vmem:[#allocation10 + $0x378] sm:$0xff]
    %v1547 = vld [vmem:[#allocation10 + $0x380] sm:$0xff]
    %v1548 = vld [vmem:[#allocation10 + $0x388] sm:$0xff]
    %v1549 = vld [vmem:[#allocation10 + $0x390] sm:$0xff]
    %v1550 = vld [vmem:[#allocation10 + $0x398] sm:$0xff]
    %v1551 = vld [vmem:[#allocation10 + $0x3a0] sm:$0xff]
    %v1552 = vld [vmem:[#allocation10 + $0x3a8] sm:$0xff]
    %v1553 = vld [vmem:[#allocation10 + $0x3b0] sm:$0xff]
    %v1554 = vld [vmem:[#allocation10 + $0x3b8] sm:$0xff]
    %v1555 = vld [vmem:[#allocation10 + $0x3c0] sm:$0xff]
    %v1556 = vld [vmem:[#allocation10 + $0x3c8] sm:$0xff]
    %v1557 = vld [vmem:[#allocation10 + $0x3d0] sm:$0xff]
    %v1558 = vld [vmem:[#allocation10 + $0x3d8] sm:$0xff]
    %v1559 = vld [vmem:[#allocation10 + $0x3e0] sm:$0xff]
    %v1560 = vld [vmem:[#allocation10 + $0x3e8] sm:$0xff]
    %v1561 = vld [vmem:[#allocation10 + $0x3f0] sm:$0xff]
    %v1562 = vld [vmem:[#allocation10 + $0x3f8] sm:$0xff]
    %v1563 = vperm.slane %v103, 2
    %v1564 = vperm.slane %v103, 6
    %v1565 = vperm.slane %v104, 2
    %v1566 = vperm.slane %v104, 6
    %v1571 = vperm.slane %v1563, 2
    %v1572 = vperm.slane %v1564, 2
    %v1573 = vperm.slane %v1565, 2
    %v1574 = vperm.slane %v1566, 2
    %v1703 = vunpack.c.l.b16 %v1435
    %v1704 = vunpack.c.h.b16 %v1435
    %v1705 = vunpack.c.l.b16 %v1436
    %v1706 = vunpack.c.h.b16 %v1436
    %v1707 = vunpack.c.l.b16 %v1437
    %v1708 = vunpack.c.h.b16 %v1437
    %v1709 = vunpack.c.l.b16 %v1438
    %v1710 = vunpack.c.h.b16 %v1438
    %v1711 = vunpack.c.l.b16 %v1439
    %v1712 = vunpack.c.h.b16 %v1439
    %v1713 = vunpack.c.l.b16 %v1440
    %v1714 = vunpack.c.h.b16 %v1440
    %v1715 = vunpack.c.l.b16 %v1441
    %v1716 = vunpack.c.h.b16 %v1441
    %v1717 = vunpack.c.l.b16 %v1442
    %v1718 = vunpack.c.h.b16 %v1442
    %v1719 = vunpack.c.l.b16 %v1443
    %v1720 = vunpack.c.h.b16 %v1443
    %v1721 = vunpack.c.l.b16 %v1444
    %v1722 = vunpack.c.h.b16 %v1444
    %v1723 = vunpack.c.l.b16 %v1445
    %v1724 = vunpack.c.h.b16 %v1445
    %v1725 = vunpack.c.l.b16 %v1446
    %v1726 = vunpack.c.h.b16 %v1446
    %v1727 = vunpack.c.l.b16 %v1447
    %v1728 = vunpack.c.h.b16 %v1447
    %v1729 = vunpack.c.l.b16 %v1448
    %v1730 = vunpack.c.h.b16 %v1448
    %v1731 = vunpack.c.l.b16 %v1449
    %v1732 = vunpack.c.h.b16 %v1449
    %v1733 = vunpack.c.l.b16 %v1450
    %v1734 = vunpack.c.h.b16 %v1450
    %v1735 = vunpack.c.l.b16 %v1451
    %v1736 = vunpack.c.h.b16 %v1451
    %v1737 = vunpack.c.l.b16 %v1452
    %v1738 = vunpack.c.h.b16 %v1452
    %v1739 = vunpack.c.l.b16 %v1453
    %v1740 = vunpack.c.h.b16 %v1453
    %v1741 = vunpack.c.l.b16 %v1454
    %v1742 = vunpack.c.h.b16 %v1454
    %v1743 = vunpack.c.l.b16 %v1455
    %v1744 = vunpack.c.h.b16 %v1455
    %v1745 = vunpack.c.l.b16 %v1456
    %v1746 = vunpack.c.h.b16 %v1456
    %v1747 = vunpack.c.l.b16 %v1457
    %v1748 = vunpack.c.h.b16 %v1457
    %v1749 = vunpack.c.l.b16 %v1458
    %v1750 = vunpack.c.h.b16 %v1458
    %v1751 = vunpack.c.l.b16 %v1459
    %v1752 = vunpack.c.h.b16 %v1459
    %v1753 = vunpack.c.l.b16 %v1460
    %v1754 = vunpack.c.h.b16 %v1460
    %v1755 = vunpack.c.l.b16 %v1461
    %v1756 = vunpack.c.h.b16 %v1461
    %v1757 = vunpack.c.l.b16 %v1462
    %v1758 = vunpack.c.h.b16 %v1462
    %v1759 = vunpack.c.l.b16 %v1463
    %v1760 = vunpack.c.h.b16 %v1463
    %v1761 = vunpack.c.l.b16 %v1464
    %v1762 = vunpack.c.h.b16 %v1464
    %v1763 = vunpack.c.l.b16 %v1465
    %v1764 = vunpack.c.h.b16 %v1465
    %v1765 = vunpack.c.l.b16 %v1466
    %v1766 = vunpack.c.h.b16 %v1466
    %v1767 = vunpack.c.l.b16 %v1467
    %v1768 = vunpack.c.h.b16 %v1467
    %v1769 = vunpack.c.l.b16 %v1468
    %v1770 = vunpack.c.h.b16 %v1468
    %v1771 = vunpack.c.l.b16 %v1469
    %v1772 = vunpack.c.h.b16 %v1469
    %v1773 = vunpack.c.l.b16 %v1470
    %v1774 = vunpack.c.h.b16 %v1470
    %v1775 = vunpack.c.l.b16 %v1471
    %v1776 = vunpack.c.h.b16 %v1471
    %v1777 = vunpack.c.l.b16 %v1472
    %v1778 = vunpack.c.h.b16 %v1472
    %v1779 = vunpack.c.l.b16 %v1473
    %v1780 = vunpack.c.h.b16 %v1473
    %v1781 = vunpack.c.l.b16 %v1474
    %v1782 = vunpack.c.h.b16 %v1474
    %v1783 = vunpack.c.l.b16 %v1475
    %v1784 = vunpack.c.h.b16 %v1475
    %v1785 = vunpack.c.l.b16 %v1476
    %v1786 = vunpack.c.h.b16 %v1476
    %v1787 = vunpack.c.l.b16 %v1477
    %v1788 = vunpack.c.h.b16 %v1477
    %v1789 = vunpack.c.l.b16 %v1478
    %v1790 = vunpack.c.h.b16 %v1478
    %v1791 = vunpack.c.l.b16 %v1479
    %v1792 = vunpack.c.h.b16 %v1479
    %v1793 = vunpack.c.l.b16 %v1480
    %v1794 = vunpack.c.h.b16 %v1480
    %v1795 = vunpack.c.l.b16 %v1481
    %v1796 = vunpack.c.h.b16 %v1481
    %v1797 = vunpack.c.l.b16 %v1482
    %v1798 = vunpack.c.h.b16 %v1482
    %v1799 = vunpack.c.l.b16 %v1483
    %v1800 = vunpack.c.h.b16 %v1483
    %v1801 = vunpack.c.l.b16 %v1484
    %v1802 = vunpack.c.h.b16 %v1484
    %v1803 = vunpack.c.l.b16 %v1485
    %v1804 = vunpack.c.h.b16 %v1485
    %v1805 = vunpack.c.l.b16 %v1486
    %v1806 = vunpack.c.h.b16 %v1486
    %v1807 = vunpack.c.l.b16 %v1487
    %v1808 = vunpack.c.h.b16 %v1487
    %v1809 = vunpack.c.l.b16 %v1488
    %v1810 = vunpack.c.h.b16 %v1488
    %v1811 = vunpack.c.l.b16 %v1489
    %v1812 = vunpack.c.h.b16 %v1489
    %v1813 = vunpack.c.l.b16 %v1490
    %v1814 = vunpack.c.h.b16 %v1490
    %v1815 = vunpack.c.l.b16 %v1491
    %v1816 = vunpack.c.h.b16 %v1491
    %v1817 = vunpack.c.l.b16 %v1492
    %v1818 = vunpack.c.h.b16 %v1492
    %v1819 = vunpack.c.l.b16 %v1493
    %v1820 = vunpack.c.h.b16 %v1493
    %v1821 = vunpack.c.l.b16 %v1494
    %v1822 = vunpack.c.h.b16 %v1494
    %v1823 = vunpack.c.l.b16 %v1495
    %v1824 = vunpack.c.h.b16 %v1495
    %v1825 = vunpack.c.l.b16 %v1496
    %v1826 = vunpack.c.h.b16 %v1496
    %v1827 = vunpack.c.l.b16 %v1497
    %v1828 = vunpack.c.h.b16 %v1497
    %v1829 = vunpack.c.l.b16 %v1498
    %v1830 = vunpack.c.h.b16 %v1498
    %v1831 = vunpack.c.l.b16 %v1499
    %v1832 = vunpack.c.h.b16 %v1499
    %v1833 = vunpack.c.l.b16 %v1500
    %v1834 = vunpack.c.h.b16 %v1500
    %v1835 = vunpack.c.l.b16 %v1501
    %v1836 = vunpack.c.h.b16 %v1501
    %v1837 = vunpack.c.l.b16 %v1502
    %v1838 = vunpack.c.h.b16 %v1502
    %v1839 = vunpack.c.l.b16 %v1503
    %v1840 = vunpack.c.h.b16 %v1503
    %v1841 = vunpack.c.l.b16 %v1504
    %v1842 = vunpack.c.h.b16 %v1504
    %v1843 = vunpack.c.l.b16 %v1505
    %v1844 = vunpack.c.h.b16 %v1505
    %v1845 = vunpack.c.l.b16 %v1506
    %v1846 = vunpack.c.h.b16 %v1506
    %v1847 = vunpack.c.l.b16 %v1507
    %v1848 = vunpack.c.h.b16 %v1507
    %v1849 = vunpack.c.l.b16 %v1508
    %v1850 = vunpack.c.h.b16 %v1508
    %v1851 = vunpack.c.l.b16 %v1509
    %v1852 = vunpack.c.h.b16 %v1509
    %v1853 = vunpack.c.l.b16 %v1510
    %v1854 = vunpack.c.h.b16 %v1510
    %v1855 = vunpack.c.l.b16 %v1511
    %v1856 = vunpack.c.h.b16 %v1511
    %v1857 = vunpack.c.l.b16 %v1512
    %v1858 = vunpack.c.h.b16 %v1512
    %v1859 = vunpack.c.l.b16 %v1513
    %v1860 = vunpack.c.h.b16 %v1513
    %v1861 = vunpack.c.l.b16 %v1514
    %v1862 = vunpack.c.h.b16 %v1514
    %v1863 = vunpack.c.l.b16 %v1515
    %v1864 = vunpack.c.h.b16 %v1515
    %v1865 = vunpack.c.l.b16 %v1516
    %v1866 = vunpack.c.h.b16 %v1516
    %v1867 = vunpack.c.l.b16 %v1517
    %v1868 = vunpack.c.h.b16 %v1517
    %v1869 = vunpack.c.l.b16 %v1518
    %v1870 = vunpack.c.h.b16 %v1518
    %v1871 = vunpack.c.l.b16 %v1519
    %v1872 = vunpack.c.h.b16 %v1519
    %v1873 = vunpack.c.l.b16 %v1520
    %v1874 = vunpack.c.h.b16 %v1520
    %v1875 = vunpack.c.l.b16 %v1521
    %v1876 = vunpack.c.h.b16 %v1521
    %v1877 = vunpack.c.l.b16 %v1522
    %v1878 = vunpack.c.h.b16 %v1522
    %v1879 = vunpack.c.l.b16 %v1523
    %v1880 = vunpack.c.h.b16 %v1523
    %v1881 = vunpack.c.l.b16 %v1524
    %v1882 = vunpack.c.h.b16 %v1524
    %v1883 = vunpack.c.l.b16 %v1525
    %v1884 = vunpack.c.h.b16 %v1525
    %v1885 = vunpack.c.l.b16 %v1526
    %v1886 = vunpack.c.h.b16 %v1526
    %v1887 = vunpack.c.l.b16 %v1527
    %v1888 = vunpack.c.h.b16 %v1527
    %v1889 = vunpack.c.l.b16 %v1528
    %v1890 = vunpack.c.h.b16 %v1528
    %v1891 = vunpack.c.l.b16 %v1529
    %v1892 = vunpack.c.h.b16 %v1529
    %v1893 = vunpack.c.l.b16 %v1530
    %v1894 = vunpack.c.h.b16 %v1530
    %v1895 = vunpack.c.l.b16 %v1531
    %v1896 = vunpack.c.h.b16 %v1531
    %v1897 = vunpack.c.l.b16 %v1532
    %v1898 = vunpack.c.h.b16 %v1532
    %v1899 = vunpack.c.l.b16 %v1533
    %v1900 = vunpack.c.h.b16 %v1533
    %v1901 = vunpack.c.l.b16 %v1534
    %v1902 = vunpack.c.h.b16 %v1534
    %v1903 = vunpack.c.l.b16 %v1535
    %v1904 = vunpack.c.h.b16 %v1535
    %v1905 = vunpack.c.l.b16 %v1536
    %v1906 = vunpack.c.h.b16 %v1536
    %v1907 = vunpack.c.l.b16 %v1537
    %v1908 = vunpack.c.h.b16 %v1537
    %v1909 = vunpack.c.l.b16 %v1538
    %v1910 = vunpack.c.h.b16 %v1538
    %v1911 = vunpack.c.l.b16 %v1539
    %v1912 = vunpack.c.h.b16 %v1539
    %v1913 = vunpack.c.l.b16 %v1540
    %v1914 = vunpack.c.h.b16 %v1540
    %v1915 = vunpack.c.l.b16 %v1541
    %v1916 = vunpack.c.h.b16 %v1541
    %v1917 = vunpack.c.l.b16 %v1542
    %v1918 = vunpack.c.h.b16 %v1542
    %v1919 = vunpack.c.l.b16 %v1543
    %v1920 = vunpack.c.h.b16 %v1543
    %v1921 = vunpack.c.l.b16 %v1544
    %v1922 = vunpack.c.h.b16 %v1544
    %v1923 = vunpack.c.l.b16 %v1545
    %v1924 = vunpack.c.h.b16 %v1545
    %v1925 = vunpack.c.l.b16 %v1546
    %v1926 = vunpack.c.h.b16 %v1546
    %v1927 = vunpack.c.l.b16 %v1547
    %v1928 = vunpack.c.h.b16 %v1547
    %v1929 = vunpack.c.l.b16 %v1548
    %v1930 = vunpack.c.h.b16 %v1548
    %v1931 = vunpack.c.l.b16 %v1549
    %v1932 = vunpack.c.h.b16 %v1549
    %v1933 = vunpack.c.l.b16 %v1550
    %v1934 = vunpack.c.h.b16 %v1550
    %v1935 = vunpack.c.l.b16 %v1551
    %v1936 = vunpack.c.h.b16 %v1551
    %v1937 = vunpack.c.l.b16 %v1552
    %v1938 = vunpack.c.h.b16 %v1552
    %v1939 = vunpack.c.l.b16 %v1553
    %v1940 = vunpack.c.h.b16 %v1553
    %v1941 = vunpack.c.l.b16 %v1554
    %v1942 = vunpack.c.h.b16 %v1554
    %v1943 = vunpack.c.l.b16 %v1555
    %v1944 = vunpack.c.h.b16 %v1555
    %v1945 = vunpack.c.l.b16 %v1556
    %v1946 = vunpack.c.h.b16 %v1556
    %v1947 = vunpack.c.l.b16 %v1557
    %v1948 = vunpack.c.h.b16 %v1557
    %v1949 = vunpack.c.l.b16 %v1558
    %v1950 = vunpack.c.h.b16 %v1558
    %v1951 = vunpack.c.l.b16 %v1559
    %v1952 = vunpack.c.h.b16 %v1559
    %v1953 = vunpack.c.l.b16 %v1560
    %v1954 = vunpack.c.h.b16 %v1560
    %v1955 = vunpack.c.l.b16 %v1561
    %v1956 = vunpack.c.h.b16 %v1561
    %v1957 = vunpack.c.l.b16 %v1562
    %v1958 = vunpack.c.h.b16 %v1562
    %v1959 = vpack.c.b16 %v1707, %v1703
    %v1960 = vpack.c.b16 %v1708, %v1704
    %v1961 = vpack.c.b16 %v1709, %v1705
    %v1962 = vpack.c.b16 %v1710, %v1706
    %v1963 = vpack.c.b16 %v1715, %v1711
    %v1964 = vpack.c.b16 %v1716, %v1712
    %v1965 = vpack.c.b16 %v1717, %v1713
    %v1966 = vpack.c.b16 %v1718, %v1714
    %v1967 = vpack.c.b16 %v1723, %v1719
    %v1968 = vpack.c.b16 %v1724, %v1720
    %v1969 = vpack.c.b16 %v1725, %v1721
    %v1970 = vpack.c.b16 %v1726, %v1722
    %v1971 = vpack.c.b16 %v1731, %v1727
    %v1972 = vpack.c.b16 %v1732, %v1728
    %v1973 = vpack.c.b16 %v1733, %v1729
    %v1974 = vpack.c.b16 %v1734, %v1730
    %v1975 = vpack.c.b16 %v1739, %v1735
    %v1976 = vpack.c.b16 %v1740, %v1736
    %v1977 = vpack.c.b16 %v1741, %v1737
    %v1978 = vpack.c.b16 %v1742, %v1738
    %v1979 = vpack.c.b16 %v1747, %v1743
    %v1980 = vpack.c.b16 %v1748, %v1744
    %v1981 = vpack.c.b16 %v1749, %v1745
    %v1982 = vpack.c.b16 %v1750, %v1746
    %v1983 = vpack.c.b16 %v1755, %v1751
    %v1984 = vpack.c.b16 %v1756, %v1752
    %v1985 = vpack.c.b16 %v1757, %v1753
    %v1986 = vpack.c.b16 %v1758, %v1754
    %v1987 = vpack.c.b16 %v1763, %v1759
    %v1988 = vpack.c.b16 %v1764, %v1760
    %v1989 = vpack.c.b16 %v1765, %v1761
    %v1990 = vpack.c.b16 %v1766, %v1762
    %v1991 = vpack.c.b16 %v1771, %v1767
    %v1992 = vpack.c.b16 %v1772, %v1768
    %v1993 = vpack.c.b16 %v1773, %v1769
    %v1994 = vpack.c.b16 %v1774, %v1770
    %v1995 = vpack.c.b16 %v1779, %v1775
    %v1996 = vpack.c.b16 %v1780, %v1776
    %v1997 = vpack.c.b16 %v1781, %v1777
    %v1998 = vpack.c.b16 %v1782, %v1778
    %v1999 = vpack.c.b16 %v1787, %v1783
    %v2000 = vpack.c.b16 %v1788, %v1784
    %v2001 = vpack.c.b16 %v1789, %v1785
    %v2002 = vpack.c.b16 %v1790, %v1786
    %v2003 = vpack.c.b16 %v1795, %v1791
    %v2004 = vpack.c.b16 %v1796, %v1792
    %v2005 = vpack.c.b16 %v1797, %v1793
    %v2006 = vpack.c.b16 %v1798, %v1794
    %v2007 = vpack.c.b16 %v1803, %v1799
    %v2008 = vpack.c.b16 %v1804, %v1800
    %v2009 = vpack.c.b16 %v1805, %v1801
    %v2010 = vpack.c.b16 %v1806, %v1802
    %v2011 = vpack.c.b16 %v1811, %v1807
    %v2012 = vpack.c.b16 %v1812, %v1808
    %v2013 = vpack.c.b16 %v1813, %v1809
    %v2014 = vpack.c.b16 %v1814, %v1810
    %v2015 = vpack.c.b16 %v1819, %v1815
    %v2016 = vpack.c.b16 %v1820, %v1816
    %v2017 = vpack.c.b16 %v1821, %v1817
    %v2018 = vpack.c.b16 %v1822, %v1818
    %v2019 = vpack.c.b16 %v1827, %v1823
    %v2020 = vpack.c.b16 %v1828, %v1824
    %v2021 = vpack.c.b16 %v1829, %v1825
    %v2022 = vpack.c.b16 %v1830, %v1826
    %v2023 = vpack.c.b16 %v1835, %v1831
    %v2024 = vpack.c.b16 %v1836, %v1832
    %v2025 = vpack.c.b16 %v1837, %v1833
    %v2026 = vpack.c.b16 %v1838, %v1834
    %v2027 = vpack.c.b16 %v1843, %v1839
    %v2028 = vpack.c.b16 %v1844, %v1840
    %v2029 = vpack.c.b16 %v1845, %v1841
    %v2030 = vpack.c.b16 %v1846, %v1842
    %v2031 = vpack.c.b16 %v1851, %v1847
    %v2032 = vpack.c.b16 %v1852, %v1848
    %v2033 = vpack.c.b16 %v1853, %v1849
    %v2034 = vpack.c.b16 %v1854, %v1850
    %v2035 = vpack.c.b16 %v1859, %v1855
    %v2036 = vpack.c.b16 %v1860, %v1856
    %v2037 = vpack.c.b16 %v1861, %v1857
    %v2038 = vpack.c.b16 %v1862, %v1858
    %v2039 = vpack.c.b16 %v1867, %v1863
    %v2040 = vpack.c.b16 %v1868, %v1864
    %v2041 = vpack.c.b16 %v1869, %v1865
    %v2042 = vpack.c.b16 %v1870, %v1866
    %v2043 = vpack.c.b16 %v1875, %v1871
    %v2044 = vpack.c.b16 %v1876, %v1872
    %v2045 = vpack.c.b16 %v1877, %v1873
    %v2046 = vpack.c.b16 %v1878, %v1874
    %v2047 = vpack.c.b16 %v1883, %v1879
    %v2048 = vpack.c.b16 %v1884, %v1880
    %v2049 = vpack.c.b16 %v1885, %v1881
    %v2050 = vpack.c.b16 %v1886, %v1882
    %v2051 = vpack.c.b16 %v1891, %v1887
    %v2052 = vpack.c.b16 %v1892, %v1888
    %v2053 = vpack.c.b16 %v1893, %v1889
    %v2054 = vpack.c.b16 %v1894, %v1890
    %v2055 = vpack.c.b16 %v1899, %v1895
    %v2056 = vpack.c.b16 %v1900, %v1896
    %v2057 = vpack.c.b16 %v1901, %v1897
    %v2058 = vpack.c.b16 %v1902, %v1898
    %v2059 = vpack.c.b16 %v1907, %v1903
    %v2060 = vpack.c.b16 %v1908, %v1904
    %v2061 = vpack.c.b16 %v1909, %v1905
    %v2062 = vpack.c.b16 %v1910, %v1906
    %v2063 = vpack.c.b16 %v1915, %v1911
    %v2064 = vpack.c.b16 %v1916, %v1912
    %v2065 = vpack.c.b16 %v1917, %v1913
    %v2066 = vpack.c.b16 %v1918, %v1914
    %v2067 = vpack.c.b16 %v1923, %v1919
    %v2068 = vpack.c.b16 %v1924, %v1920
    %v2069 = vpack.c.b16 %v1925, %v1921
    %v2070 = vpack.c.b16 %v1926, %v1922
    %v2071 = vpack.c.b16 %v1931, %v1927
    %v2072 = vpack.c.b16 %v1932, %v1928
    %v2073 = vpack.c.b16 %v1933, %v1929
    %v2074 = vpack.c.b16 %v1934, %v1930
    %v2075 = vpack.c.b16 %v1939, %v1935
    %v2076 = vpack.c.b16 %v1940, %v1936
    %v2077 = vpack.c.b16 %v1941, %v1937
    %v2078 = vpack.c.b16 %v1942, %v1938
    %v2079 = vpack.c.b16 %v1947, %v1943
    %v2080 = vpack.c.b16 %v1948, %v1944
    %v2081 = vpack.c.b16 %v1949, %v1945
    %v2082 = vpack.c.b16 %v1950, %v1946
    %v2083 = vpack.c.b16 %v1955, %v1951
    %v2084 = vpack.c.b16 %v1956, %v1952
    %v2085 = vpack.c.b16 %v1957, %v1953
    %v2086 = vpack.c.b16 %v1958, %v1954
    %2215 = vmatpush.bf16.msra.mxu0 %v1987
    %2216 = vmatpush.bf16.msra.mxu0 %v1983
    %2217 = vmatpush.bf16.msra.mxu0 %v1979
    %2218 = vmatpush.bf16.msra.mxu0 %v1975
    %2219 = vmatpush.bf16.msra.mxu0 %v1971
    %2220 = vmatpush.bf16.msra.mxu0 %v1967
    %2221 = vmatpush.bf16.msra.mxu0 %v1963
    %2222 = vmatpush.bf16.msra.mxu0 %v1959
    %2223 = vmatmul.bf16.gmra.mxu0 %v1431
    %v2224 = vpop.f32.mrf.mxu0
    %v2225 = vadd.f32 %v1571, %v2224
    %v2226 = vpop.f32.mrf.mxu0
    %v2227 = vadd.f32 %v1571, %v2226
    %2228 = vdwg.mxu0
    %2229 = vmatpush.bf16.msra.mxu0 %v2019
    %2230 = vmatpush.bf16.msra.mxu0 %v2015
    %2231 = vmatpush.bf16.msra.mxu0 %v2011
    %2232 = vmatpush.bf16.msra.mxu0 %v2007
    %2233 = vmatpush.bf16.msra.mxu0 %v2003
    %2234 = vmatpush.bf16.msra.mxu0 %v1999
    %2235 = vmatpush.bf16.msra.mxu0 %v1995
    %2236 = vmatpush.bf16.msra.mxu0 %v1991
    %2237 = vmatmul.bf16.gmra.mxu0 %v1432
    %v2238 = vpop.f32.mrf.mxu0
    %v2239 = vadd.f32 %v2225, %v2238
    %v2240 = vpop.f32.mrf.mxu0
    %v2241 = vadd.f32 %v2227, %v2240
    %2242 = vdwg.mxu0
    %2243 = vmatpush.bf16.msra.mxu0 %v2051
    %2244 = vmatpush.bf16.msra.mxu0 %v2047
    %2245 = vmatpush.bf16.msra.mxu0 %v2043
    %2246 = vmatpush.bf16.msra.mxu0 %v2039
    %2247 = vmatpush.bf16.msra.mxu0 %v2035
    %2248 = vmatpush.bf16.msra.mxu0 %v2031
    %2249 = vmatpush.bf16.msra.mxu0 %v2027
    %2250 = vmatpush.bf16.msra.mxu0 %v2023
    %2251 = vmatmul.bf16.gmra.mxu0 %v1433
    %v2252 = vpop.f32.mrf.mxu0
    %v2253 = vadd.f32 %v2239, %v2252
    %v2254 = vpop.f32.mrf.mxu0
    %v2255 = vadd.f32 %v2241, %v2254
    %2256 = vdwg.mxu0
    %2257 = vmatpush.bf16.msra.mxu0 %v2083
    %2258 = vmatpush.bf16.msra.mxu0 %v2079
    %2259 = vmatpush.bf16.msra.mxu0 %v2075
    %2260 = vmatpush.bf16.msra.mxu0 %v2071
    %2261 = vmatpush.bf16.msra.mxu0 %v2067
    %2262 = vmatpush.bf16.msra.mxu0 %v2063
    %2263 = vmatpush.bf16.msra.mxu0 %v2059
    %2264 = vmatpush.bf16.msra.mxu0 %v2055
    %2265 = vmatmul.bf16.gmra.mxu0 %v1434
    %v2266 = vpop.f32.mrf.mxu0
    %v2267 = vadd.f32 %v2253, %v2266
    %v2268 = vpop.f32.mrf.mxu0
    %v2269 = vadd.f32 %v2255, %v2268
    %2270 = vdwg.mxu0
    %2271 = vmatpush.bf16.msra.mxu0 %v1988
    %2272 = vmatpush.bf16.msra.mxu0 %v1984
    %2273 = vmatpush.bf16.msra.mxu0 %v1980
    %2274 = vmatpush.bf16.msra.mxu0 %v1976
    %2275 = vmatpush.bf16.msra.mxu0 %v1972
    %2276 = vmatpush.bf16.msra.mxu0 %v1968
    %2277 = vmatpush.bf16.msra.mxu0 %v1964
    %2278 = vmatpush.bf16.msra.mxu0 %v1960
    %2279 = vmatmul.bf16.gmra.mxu0 %v1431
    %v2280 = vpop.f32.mrf.mxu0
    %v2281 = vadd.f32 %v1572, %v2280
    %v2282 = vpop.f32.mrf.mxu0
    %v2283 = vadd.f32 %v1572, %v2282
    %2284 = vdwg.mxu0
    %2285 = vmatpush.bf16.msra.mxu0 %v2020
    %2286 = vmatpush.bf16.msra.mxu0 %v2016
    %2287 = vmatpush.bf16.msra.mxu0 %v2012
    %2288 = vmatpush.bf16.msra.mxu0 %v2008
    %2289 = vmatpush.bf16.msra.mxu0 %v2004
    %2290 = vmatpush.bf16.msra.mxu0 %v2000
    %2291 = vmatpush.bf16.msra.mxu0 %v1996
    %2292 = vmatpush.bf16.msra.mxu0 %v1992
    %2293 = vmatmul.bf16.gmra.mxu0 %v1432
    %v2294 = vpop.f32.mrf.mxu0
    %v2295 = vadd.f32 %v2281, %v2294
    %v2296 = vpop.f32.mrf.mxu0
    %v2297 = vadd.f32 %v2283, %v2296
    %2298 = vdwg.mxu0
    %2299 = vmatpush.bf16.msra.mxu0 %v2052
    %2300 = vmatpush.bf16.msra.mxu0 %v2048
    %2301 = vmatpush.bf16.msra.mxu0 %v2044
    %2302 = vmatpush.bf16.msra.mxu0 %v2040
    %2303 = vmatpush.bf16.msra.mxu0 %v2036
    %2304 = vmatpush.bf16.msra.mxu0 %v2032
    %2305 = vmatpush.bf16.msra.mxu0 %v2028
    %2306 = vmatpush.bf16.msra.mxu0 %v2024
    %2307 = vmatmul.bf16.gmra.mxu0 %v1433
    %v2308 = vpop.f32.mrf.mxu0
    %v2309 = vadd.f32 %v2295, %v2308
    %v2310 = vpop.f32.mrf.mxu0
    %v2311 = vadd.f32 %v2297, %v2310
    %2312 = vdwg.mxu0
    %2313 = vmatpush.bf16.msra.mxu0 %v2084
    %2314 = vmatpush.bf16.msra.mxu0 %v2080
    %2315 = vmatpush.bf16.msra.mxu0 %v2076
    %2316 = vmatpush.bf16.msra.mxu0 %v2072
    %2317 = vmatpush.bf16.msra.mxu0 %v2068
    %2318 = vmatpush.bf16.msra.mxu0 %v2064
    %2319 = vmatpush.bf16.msra.mxu0 %v2060
    %2320 = vmatpush.bf16.msra.mxu0 %v2056
    %2321 = vmatmul.bf16.gmra.mxu0 %v1434
    %v2322 = vpop.f32.mrf.mxu0
    %v2323 = vadd.f32 %v2309, %v2322
    %v2324 = vpop.f32.mrf.mxu0
    %v2325 = vadd.f32 %v2311, %v2324
    %2326 = vdwg.mxu0
    %2327 = vmatpush.bf16.msra.mxu0 %v1989
    %2328 = vmatpush.bf16.msra.mxu0 %v1985
    %2329 = vmatpush.bf16.msra.mxu0 %v1981
    %2330 = vmatpush.bf16.msra.mxu0 %v1977
    %2331 = vmatpush.bf16.msra.mxu0 %v1973
    %2332 = vmatpush.bf16.msra.mxu0 %v1969
    %2333 = vmatpush.bf16.msra.mxu0 %v1965
    %2334 = vmatpush.bf16.msra.mxu0 %v1961
    %2335 = vmatmul.bf16.gmra.mxu0 %v1431
    %v2336 = vpop.f32.mrf.mxu0
    %v2337 = vadd.f32 %v1573, %v2336
    %v2338 = vpop.f32.mrf.mxu0
    %v2339 = vadd.f32 %v1573, %v2338
    %2340 = vdwg.mxu0
    %2341 = vmatpush.bf16.msra.mxu0 %v2021
    %2342 = vmatpush.bf16.msra.mxu0 %v2017
    %2343 = vmatpush.bf16.msra.mxu0 %v2013
    %2344 = vmatpush.bf16.msra.mxu0 %v2009
    %2345 = vmatpush.bf16.msra.mxu0 %v2005
    %2346 = vmatpush.bf16.msra.mxu0 %v2001
    %2347 = vmatpush.bf16.msra.mxu0 %v1997
    %2348 = vmatpush.bf16.msra.mxu0 %v1993
    %2349 = vmatmul.bf16.gmra.mxu0 %v1432
    %v2350 = vpop.f32.mrf.mxu0
    %v2351 = vadd.f32 %v2337, %v2350
    %v2352 = vpop.f32.mrf.mxu0
    %v2353 = vadd.f32 %v2339, %v2352
    %2354 = vdwg.mxu0
    %2355 = vmatpush.bf16.msra.mxu0 %v2053
    %2356 = vmatpush.bf16.msra.mxu0 %v2049
    %2357 = vmatpush.bf16.msra.mxu0 %v2045
    %2358 = vmatpush.bf16.msra.mxu0 %v2041
    %2359 = vmatpush.bf16.msra.mxu0 %v2037
    %2360 = vmatpush.bf16.msra.mxu0 %v2033
    %2361 = vmatpush.bf16.msra.mxu0 %v2029
    %2362 = vmatpush.bf16.msra.mxu0 %v2025
    %2363 = vmatmul.bf16.gmra.mxu0 %v1433
    %v2364 = vpop.f32.mrf.mxu0
    %v2365 = vadd.f32 %v2351, %v2364
    %v2366 = vpop.f32.mrf.mxu0
    %v2367 = vadd.f32 %v2353, %v2366
    %2368 = vdwg.mxu0
    %2369 = vmatpush.bf16.msra.mxu0 %v2085
    %2370 = vmatpush.bf16.msra.mxu0 %v2081
    %2371 = vmatpush.bf16.msra.mxu0 %v2077
    %2372 = vmatpush.bf16.msra.mxu0 %v2073
    %2373 = vmatpush.bf16.msra.mxu0 %v2069
    %2374 = vmatpush.bf16.msra.mxu0 %v2065
    %2375 = vmatpush.bf16.msra.mxu0 %v2061
    %2376 = vmatpush.bf16.msra.mxu0 %v2057
    %2377 = vmatmul.bf16.gmra.mxu0 %v1434
    %v2378 = vpop.f32.mrf.mxu0
    %v2379 = vadd.f32 %v2365, %v2378
    %v2380 = vpop.f32.mrf.mxu0
    %v2381 = vadd.f32 %v2367, %v2380
    %2382 = vdwg.mxu0
    %2383 = vmatpush.bf16.msra.mxu0 %v1990
    %2384 = vmatpush.bf16.msra.mxu0 %v1986
    %2385 = vmatpush.bf16.msra.mxu0 %v1982
    %2386 = vmatpush.bf16.msra.mxu0 %v1978
    %2387 = vmatpush.bf16.msra.mxu0 %v1974
    %2388 = vmatpush.bf16.msra.mxu0 %v1970
    %2389 = vmatpush.bf16.msra.mxu0 %v1966
    %2390 = vmatpush.bf16.msra.mxu0 %v1962
    %2391 = vmatmul.bf16.gmra.mxu0 %v1431
    %v2392 = vpop.f32.mrf.mxu0
    %v2393 = vadd.f32 %v1574, %v2392
    %v2394 = vpop.f32.mrf.mxu0
    %v2395 = vadd.f32 %v1574, %v2394
    %2396 = vdwg.mxu0
    %2397 = vmatpush.bf16.msra.mxu0 %v2022
    %2398 = vmatpush.bf16.msra.mxu0 %v2018
    %2399 = vmatpush.bf16.msra.mxu0 %v2014
    %2400 = vmatpush.bf16.msra.mxu0 %v2010
    %2401 = vmatpush.bf16.msra.mxu0 %v2006
    %2402 = vmatpush.bf16.msra.mxu0 %v2002
    %2403 = vmatpush.bf16.msra.mxu0 %v1998
    %2404 = vmatpush.bf16.msra.mxu0 %v1994
    %2405 = vmatmul.bf16.gmra.mxu0 %v1432
    %v2406 = vpop.f32.mrf.mxu0
    %v2407 = vadd.f32 %v2393, %v2406
    %v2408 = vpop.f32.mrf.mxu0
    %v2409 = vadd.f32 %v2395, %v2408
    %2410 = vdwg.mxu0
    %2411 = vmatpush.bf16.msra.mxu0 %v2054
    %2412 = vmatpush.bf16.msra.mxu0 %v2050
    %2413 = vmatpush.bf16.msra.mxu0 %v2046
    %2414 = vmatpush.bf16.msra.mxu0 %v2042
    %2415 = vmatpush.bf16.msra.mxu0 %v2038
    %2416 = vmatpush.bf16.msra.mxu0 %v2034
    %2417 = vmatpush.bf16.msra.mxu0 %v2030
    %2418 = vmatpush.bf16.msra.mxu0 %v2026
    %2419 = vmatmul.bf16.gmra.mxu0 %v1433
    %v2420 = vpop.f32.mrf.mxu0
    %v2421 = vadd.f32 %v2407, %v2420
    %v2422 = vpop.f32.mrf.mxu0
    %v2423 = vadd.f32 %v2409, %v2422
    %2424 = vdwg.mxu0
    %2425 = vmatpush.bf16.msra.mxu0 %v2086
    %2426 = vmatpush.bf16.msra.mxu0 %v2082
    %2427 = vmatpush.bf16.msra.mxu0 %v2078
    %2428 = vmatpush.bf16.msra.mxu0 %v2074
    %2429 = vmatpush.bf16.msra.mxu0 %v2070
    %2430 = vmatpush.bf16.msra.mxu0 %v2066
    %2431 = vmatpush.bf16.msra.mxu0 %v2062
    %2432 = vmatpush.bf16.msra.mxu0 %v2058
    %2433 = vmatmul.bf16.gmra.mxu0 %v1434
    %v2434 = vpop.f32.mrf.mxu0
    %v2435 = vadd.f32 %v2421, %v2434
    %v2436 = vpop.f32.mrf.mxu0
    %v2437 = vadd.f32 %v2423, %v2436
    %2438 = vdwg.mxu0
    %vm2439 = vcmp.gt.f32.partialorder %v2267, 0.0
    %vm2440 = vcmp.gt.f32.partialorder %v2323, 0.0
    %vm2441 = vcmp.gt.f32.partialorder %v2379, 0.0
    %vm2442 = vcmp.gt.f32.partialorder %v2435, 0.0
    %vm2443 = vcmp.gt.f32.partialorder %v2269, 0.0
    %vm2444 = vcmp.gt.f32.partialorder %v2325, 0.0
    %vm2445 = vcmp.gt.f32.partialorder %v2381, 0.0
    %vm2446 = vcmp.gt.f32.partialorder %v2437, 0.0
    %v2447 = vmul.f32 %v2267, 0.2
    %v2448 = vmul.f32 %v2323, 0.2
    %v2449 = vmul.f32 %v2379, 0.2
    %v2450 = vmul.f32 %v2435, 0.2
    %v2451 = vmul.f32 %v2269, 0.2
    %v2452 = vmul.f32 %v2325, 0.2
    %v2453 = vmul.f32 %v2381, 0.2
    %v2454 = vmul.f32 %v2437, 0.2
    %v2455 = vsel %vm2439, %v2267, %v2447
    %v2456 = vsel %vm2440, %v2323, %v2448
    %v2457 = vsel %vm2441, %v2379, %v2449
    %v2458 = vsel %vm2442, %v2435, %v2450
    %v2459 = vsel %vm2443, %v2269, %v2451
    %v2460 = vsel %vm2444, %v2325, %v2452
    %v2461 = vsel %vm2445, %v2381, %v2453
    %v2462 = vsel %vm2446, %v2437, %v2454
    %v2463 = vld [vmem:[%s5] sm:$0xf]
    %v2464 = vunpack.c.l.bf16 %v2463
    %v2466 = vperm.slane %v2464, 0
    %v2467 = vperm.slane %v2464, 2
    %v2468 = vperm.slane %v2464, 4
    %v2469 = vperm.slane %v2464, 6
    %v2474 = vperm.slane %v2466, 0
    %v2475 = vperm.slane %v2467, 0
    %v2476 = vperm.slane %v2468, 0
    %v2477 = vperm.slane %v2469, 0
    %v2478 = vmul.f32 %v2455, %v2474
    %v2479 = vmul.f32 %v2456, %v2475
    %v2480 = vmul.f32 %v2457, %v2476
    %v2481 = vmul.f32 %v2458, %v2477
    %v2482 = vmul.f32 %v2459, %v2474
    %v2483 = vmul.f32 %v2460, %v2475
    %v2484 = vmul.f32 %v2461, %v2476
    %v2485 = vmul.f32 %v2462, %v2477
    %v2486 = vadd.f32 %v2478, %v2479
    %v2487 = vadd.f32 %v2486, %v2480
    %v2488 = vadd.f32 %v2487, %v2481
    %2489 = vadd.xlane.f32.xlu0 %v2488
    %v2490 = vpop.xlane.xlu0 %2489
    %v2491 = vadd.f32 %v2482, %v2483
    %v2492 = vadd.f32 %v2491, %v2484
    %v2493 = vadd.f32 %v2492, %v2485
    %2494 = vadd.xlane.f32.xlu0 %v2493
    %v2495 = vpop.xlane.xlu0 %2494
    %s2496 = sld [smem:[#allocation2]]
    %v2497 = vstv %s2496
    %v2498 = vadd.f32 %v2490, %v2497
    %v2499 = vadd.f32 %v2495, %v2497
    %vm2500 = vcmask 7168
    %2501 = vst.msk [vmem:[%s7] sm:$0xff] %vm2500, %v2498
    %2502 = vst.msk [vmem:[%s7 + $0x8] sm:$0xff] %vm2500, %v2499
    // Predicated region
    $region50: #{tpu_custom_call.1} parent=1 // pred_check
      _
    $region51: #{tpu_custom_call.1} parent=1 // pred_check_branch
      %2504 = sbr.rel (0) target = $region53
    $region52: #{tpu_custom_call.1} parent=1 // pred_region
      _
    $region53: #{tpu_custom_call.1} parent=1 // pred_fallthru
      _
    // Predicated region
    $region54: #{tpu_custom_call.1} parent=1 // pred_check
      _
    $region55: #{tpu_custom_call.1} parent=1 // pred_check_branch
      %2506 = sbr.rel (0) target = $region57
    $region56: #{tpu_custom_call.1} parent=1 // pred_region
      _
    $region57: #{tpu_custom_call.1} parent=1 // pred_fallthru
      _
    %2507 = vsyncpa [#allocation4], 1
    %2508 = vsyncpa [#allocation6], 1
    %2509 = vsyncpa [#allocation9], 1

</llo_original>
